<compile_context>
chip_gen: v6e
topology: v6e:2x2x1
jax: 0.10.0
libtpu: 0.0.40
codegen_flags: <defaults>
</compile_context>

<pallas_src>
import math

import jax
import jax.numpy as jnp
from jax.experimental import pallas as pl
from jax.experimental.pallas import tpu as pltpu

LN_EPS = 1e-5
INV_SQRT2 = 1.0 / math.sqrt(2.0)


def _gelu(x):
    # exact (erf-based) GELU, matching torch.nn.GELU default
    return 0.5 * x * (1.0 + jax.lax.erf(x * INV_SQRT2))


def _layernorm(x, g, b):
    mu = jnp.mean(x, axis=-1, keepdims=True)
    var = jnp.mean((x - mu) ** 2, axis=-1, keepdims=True)
    return (x - mu) * jax.lax.rsqrt(var + LN_EPS) * g + b


def make_kernel(num_heads, dim_heads, bt, n_tok, mm_dtype):
    internal = num_heads * dim_heads

    def kernel(x_ref, W1_ref, b1_ref, g1_ref, be1_ref,
               Wq_ref, bq_ref, Wk_ref, bk_ref, Wv_ref, bv_ref,
               qp_ref, kp_ref, mask_ref, Wo_ref, bo_ref,
               g2_ref, be2_ref, W2_ref, b2_ref, g3_ref, be3_ref,
               o_ref):
        Bt, N = bt, n_tok
        M = Bt * N

        x3 = x_ref[...]                              # (Bt, N, mlp_dim) f32
        xf = x3.reshape(M, x3.shape[-1])             # leading-dim merge (layout free)

        def mm(a, w_ref):
            # bf16 (or f32) operands, f32 accumulation on the MXU
            return jnp.dot(a.astype(mm_dtype), w_ref[...],
                           preferred_element_type=jnp.float32)

        # --- Linear(mlp_dim -> dim) + LayerNorm(dim) + GELU ---
        h = mm(xf, W1_ref) + b1_ref[...]
        h = _gelu(_layernorm(h, g1_ref[...], be1_ref[...]))      # (M, dim) f32
        h16 = h.astype(mm_dtype)                                 # cast once for QKV

        # --- EfficientAttention projections ---
        # Wq/Wk already contain "+Wv" and the q/k scales (folded in the wrapper),
        # so the three matmuls are independent.
        v = jnp.dot(h16, Wv_ref[...], preferred_element_type=jnp.float32) + bv_ref[...]
        zq = jnp.dot(h16, Wq_ref[...], preferred_element_type=jnp.float32) + bq_ref[...]
        zk = jnp.dot(h16, Wk_ref[...], preferred_element_type=jnp.float32) + bk_ref[...]

        mask = mask_ref[...]                         # (internal, internal), 1 within a head

        # q softmax over the head dim, all heads at once:
        #  - subtracting the full-row max is exact (constant shift per softmax group)
        #  - the per-head denominator is a matmul against the block mask.
        eq = jnp.exp(zq - jnp.max(zq, axis=-1, keepdims=True))
        qden = jnp.dot(eq, mask, preferred_element_type=jnp.float32)
        qs = eq / qden                                           # (M, internal)

        # k softmax over tokens (per batch element, per channel)
        k3 = zk.reshape(Bt, N, internal)
        ek = jnp.exp(k3 - jnp.max(k3, axis=1, keepdims=True))
        ks3 = ek / jnp.sum(ek, axis=1, keepdims=True)            # (Bt, N, internal)

        v3 = v.reshape(Bt, N, internal)
        qs3 = qs.reshape(Bt, N, internal)

        # content term: per-head kv = softmax(k)^T v for all heads in one batched
        # contraction; cross-head blocks are zeroed by the block-diagonal mask.
        kv = jnp.einsum('bnd,bne->bde',
                        ks3.astype(mm_dtype), v3.astype(mm_dtype),
                        preferred_element_type=jnp.float32) * mask
        out3 = jnp.einsum('bnd,bde->bne',
                          qs3.astype(mm_dtype), kv.astype(mm_dtype),
                          preferred_element_type=jnp.float32)

        # positional term: q_pos @ (k_pos @ v), same block-diagonal masking.
        # broadcast is a few KiB, done once per grid step (keeps beide einsums
        # batched matmuls with no trailing transpose).
        kp_b = jnp.broadcast_to(kp_ref[...], (Bt, internal, N))
        pkv = jnp.einsum('bdn,bne->bde', kp_b, v3.astype(mm_dtype),
                         preferred_element_type=jnp.float32) * mask
        qp_b = jnp.broadcast_to(qp_ref[...], (Bt, N, internal))
        out3 = out3 + jnp.einsum('bnd,bde->bne', qp_b, pkv.astype(mm_dtype),
                                 preferred_element_type=jnp.float32)

        attn = out3.reshape(M, internal)                          # heads already contiguous
        attn = mm(attn, Wo_ref) + bo_ref[...]

        # --- LayerNorm(dim) + GELU + Linear(dim -> mlp_dim) + LayerNorm(mlp_dim) ---
        h2 = _gelu(_layernorm(attn, g2_ref[...], be2_ref[...]))
        h3 = mm(h2, W2_ref) + b2_ref[...]
        h3 = _layernorm(h3, g3_ref[...], be3_ref[...])

        # residual + output GELU (x kept in f32 for the residual)
        y = _gelu(xf + h3)
        o_ref[...] = y.reshape(Bt, N, y.shape[-1]).astype(o_ref.dtype)

    return kernel


def _pick_batch_tile(batch, max_tile=8):
    bt = 1
    for c in range(1, min(batch, max_tile) + 1):
        if batch % c == 0:
            bt = c
    return bt


def bo_transformer_block(x, params, *, num_heads, dim_heads, q_scale, k_scale,
                         batch_tile=8, mm_dtype=jnp.bfloat16):
    B, H, W, mlp_dim = x.shape
    N = H * W
    internal = num_heads * dim_heads
    bt = _pick_batch_tile(B, batch_tile)

    x_tok = x.reshape(B, N, mlp_dim)

    # ---- x-independent preprocessing hoisted out of the kernel ----
    # positional-table normalization, flattened so the kernel never slices heads;
    # block-diagonal head mask; "+v" and q/k scales folded into the projections.
    qp = params["q_pos"] / jnp.sum(params["q_pos"], axis=-1, keepdims=True)   # (nH, N, d)
    kp = params["k_pos"] / jnp.sum(params["k_pos"], axis=-1, keepdims=True)   # (nH, d, N)
    qp_full = jnp.transpose(qp, (1, 0, 2)).reshape(N, internal).astype(mm_dtype)
    kp_full = kp.reshape(internal, N).astype(mm_dtype)
    head_id = jnp.arange(internal) // dim_heads
    head_mask = (head_id[:, None] == head_id[None, :]).astype(jnp.float32)

    Wq_f = (params["Wq"] + params["Wv"]) * q_scale      # q = (q_proj(h)+v)*q_scale
    bq_f = (params["bq"] + params["bv"]) * q_scale
    Wk_f = (params["Wk"] + params["Wv"]) * k_scale      # k = (k_proj(h)+v)*k_scale
    bk_f = (params["bk"] + params["bv"]) * k_scale

    def c(a):   # matmul weights in mm_dtype (halves DMA/VMEM bytes for bf16)
        return a.astype(mm_dtype)

    weights = [
        c(params["W1"]), params["b1"], params["g1"], params["be1"],
        c(Wq_f), bq_f, c(Wk_f), bk_f, c(params["Wv"]), params["bv"],
        qp_full, kp_full, head_mask, c(params["Wo"]), params["bo"],
        params["g2"], params["be2"], c(params["W2"]), params["b2"],
        params["g3"], params["be3"],
    ]

    kern = make_kernel(num_heads, dim_heads, bt, N, mm_dtype)

    in_specs = [pl.BlockSpec((bt, N, mlp_dim), lambda b: (b, 0, 0))]
    for arr in weights:
        # Small, grid-invariant operands: whole array every step.
        # TODO(synk): at production dim/mlp_dim, add pipeline_mode=pl.Buffered(1) on
        # these constant-index specs (halves weight VMEM residency, v7x 64 MiB) and
        # tile the token axis so activation blocks stay bounded in VMEM.
        in_specs.append(pl.BlockSpec(arr.shape, lambda b, nd=arr.ndim: (0,) * nd))

    # TODO(synk): if writeback ever dominates (mlp_dim not a multiple of 128),
    # present a lane-dense (bt, N*mlp_dim) output slab instead (needs an
    # in-kernel minor-dim reshape); negligible at these shapes.
    out = pl.pallas_call(
        kern,
        out_shape=jax.ShapeDtypeStruct((B, N, mlp_dim), x.dtype),
        grid_spec=pltpu.PrefetchScalarGridSpec(
            num_scalar_prefetch=0,
            grid=(B // bt,),
            in_specs=in_specs,
            out_specs=pl.BlockSpec((bt, N, mlp_dim), lambda b: (b, 0, 0)),
        ),
        compiler_params=pltpu.CompilerParams(
            # batch tiles are independent -> megacore sharding on v7x's 2 TCs
            dimension_semantics=("parallel",),
            # explicit scoped-VMEM budget (above v5e's 16 MiB default; usage here << 1 MiB)
            vmem_limit_bytes=32 * 1024 * 1024,
        ),
    )(x_tok, *weights)
    return out.reshape(B, H, W, mlp_dim)


# ---------------------- pure-JAX reference (for checking) ----------------------
def reference(x, p, num_heads, dim_heads, q_scale, k_scale):
    B, H, W, mlp_dim = x.shape
    N = H * W
    xt = x.reshape(B, N, mlp_dim)
    h = xt @ p["W1"] + p["b1"]
    h = _gelu(_layernorm(h, p["g1"], p["be1"]))
    v = h @ p["Wv"] + p["bv"]
    q = h @ p["Wq"] + p["bq"] + v
    k = h @ p["Wk"] + p["bk"] + v
    d = dim_heads

    def sep(t):
        return t.reshape(B, N, num_heads, d).transpose(0, 2, 1, 3)

    qh = jax.nn.softmax(sep(q) * q_scale, axis=-1)                        # (B, nH, N, d)
    kh = jax.nn.softmax(sep(k).transpose(0, 1, 3, 2) * k_scale, axis=-1)  # (B, nH, d, N)
    vh = sep(v)
    qp = p["q_pos"] / jnp.sum(p["q_pos"], -1, keepdims=True)              # (nH, N, d)
    kp = p["k_pos"] / jnp.sum(p["k_pos"], -1, keepdims=True)              # (nH, d, N)
    out = qh @ (kh @ vh) + qp[None] @ (kp[None] @ vh)
    out = out.transpose(0, 2, 1, 3).reshape(B, N, num_heads * d)
    out = out @ p["Wo"] + p["bo"]
    h2 = _gelu(_layernorm(out, p["g2"], p["be2"]))
    h3 = h2 @ p["W2"] + p["b2"]
    h3 = _layernorm(h3, p["g3"], p["be3"])
    return _gelu(xt + h3).reshape(B, H, W, mlp_dim)


# ---------------------------------- main ----------------------------------
if __name__ == "__main__":
    B = 2
    patch_shape = (4, 4)
    Hh, Ww = patch_shape
    N = Hh * Ww
    dim = 32
    num_heads = 2
    dim_heads = 16
    internal = num_heads * dim_heads          # 32
    mlp_dim = 64

    key = jax.random.PRNGKey(0)
    ks = jax.random.split(key, 16)

    def init_linear(k, fan_in, fan_out):
        kw, kb = jax.random.split(k)
        bound = 1.0 / math.sqrt(fan_in)
        Wm = jax.random.uniform(kw, (fan_in, fan_out), jnp.float32, -bound, bound)
        bm = jax.random.uniform(kb, (1, fan_out), jnp.float32, -bound, bound)
        return Wm, bm

    W1, b1 = init_linear(ks[0], mlp_dim, dim)
    Wq, bq = init_linear(ks[1], dim, internal)
    Wk, bk = init_linear(ks[2], dim, internal)
    Wv, bv = init_linear(ks[3], dim, internal)
    Wo, bo = init_linear(ks[4], internal, dim)
    W2, b2 = init_linear(ks[5], dim, mlp_dim)

    # pos_emb = rand(1,1,N,d).repeat(1,nH,1,1)/10 ; k_pos = pos_emb.transpose(2,3)
    base = jax.random.uniform(ks[6], (N, dim_heads), jnp.float32) / 10.0
    q_pos = jnp.tile(base[None], (num_heads, 1, 1))               # (nH, N, d)
    k_pos = jnp.transpose(q_pos, (0, 2, 1))                       # (nH, d, N)

    q_scale = 1.0 / math.sqrt(2 * dim_heads)
    k_scale = 1.0 / math.sqrt(2 * N)

    params = dict(
        W1=W1, b1=b1,
        g1=jnp.ones((1, dim), jnp.float32), be1=jnp.zeros((1, dim), jnp.float32),
        Wq=Wq, bq=bq, Wk=Wk, bk=bk, Wv=Wv, bv=bv,
        q_pos=q_pos, k_pos=k_pos, Wo=Wo, bo=bo,
        g2=jnp.ones((1, dim), jnp.float32), be2=jnp.zeros((1, dim), jnp.float32),
        W2=W2, b2=b2,
        g3=jnp.ones((1, mlp_dim), jnp.float32), be3=jnp.zeros((1, mlp_dim), jnp.float32),
    )

    x = jax.random.normal(ks[7], (B, Hh, Ww, mlp_dim), jnp.float32)

    # optimized path: bf16 matmul operands, f32 accumulation / LN / softmax / residual
    out = bo_transformer_block(x, params, num_heads=num_heads, dim_heads=dim_heads,
                               q_scale=q_scale, k_scale=k_scale,
                               mm_dtype=jnp.bfloat16)
    out = jax.block_until_ready(out)

    ref = reference(x, params, num_heads, dim_heads, q_scale, k_scale)
    assert out.shape == (B, Hh, Ww, mlp_dim)
    # bf16 matmul operands -> relaxed tolerance vs the f32 reference
    assert jnp.allclose(out, ref, atol=7.5e-2, rtol=7.5e-2), "bf16 kernel mismatch"

    # exact-path check: same kernel with f32 matmul operands must match tightly,
    # which validates the block-diag head masking / weight-fusion restructuring.
    out_f32 = bo_transformer_block(x, params, num_heads=num_heads, dim_heads=dim_heads,
                                   q_scale=q_scale, k_scale=k_scale,
                                   mm_dtype=jnp.float32)
    out_f32 = jax.block_until_ready(out_f32)
    assert jnp.allclose(out_f32, ref, atol=2e-3, rtol=2e-3), "f32 kernel mismatch"

    print("KERNEL_OK")
</pallas_src>

<mosaic_0001>
module attributes {stable_mosaic.version = 11 : i64} {
  func.func @kernel(%arg0: i32, %arg1: memref<2x16x64xf32, #tpu.memory_space<vmem>>, %arg2: memref<64x32xbf16, #tpu.memory_space<vmem>>, %arg3: memref<1x32xf32, #tpu.memory_space<vmem>>, %arg4: memref<1x32xf32, #tpu.memory_space<vmem>>, %arg5: memref<1x32xf32, #tpu.memory_space<vmem>>, %arg6: memref<32x32xbf16, #tpu.memory_space<vmem>>, %arg7: memref<1x32xf32, #tpu.memory_space<vmem>>, %arg8: memref<32x32xbf16, #tpu.memory_space<vmem>>, %arg9: memref<1x32xf32, #tpu.memory_space<vmem>>, %arg10: memref<32x32xbf16, #tpu.memory_space<vmem>>, %arg11: memref<1x32xf32, #tpu.memory_space<vmem>>, %arg12: memref<16x32xbf16, #tpu.memory_space<vmem>>, %arg13: memref<32x16xbf16, #tpu.memory_space<vmem>>, %arg14: memref<32x32xf32, #tpu.memory_space<vmem>>, %arg15: memref<32x32xbf16, #tpu.memory_space<vmem>>, %arg16: memref<1x32xf32, #tpu.memory_space<vmem>>, %arg17: memref<1x32xf32, #tpu.memory_space<vmem>>, %arg18: memref<1x32xf32, #tpu.memory_space<vmem>>, %arg19: memref<32x64xbf16, #tpu.memory_space<vmem>>, %arg20: memref<1x64xf32, #tpu.memory_space<vmem>>, %arg21: memref<1x64xf32, #tpu.memory_space<vmem>>, %arg22: memref<1x64xf32, #tpu.memory_space<vmem>>, %arg23: memref<2x16x64xf32, #tpu.memory_space<vmem>>) attributes {dimension_semantics = [#tpu.dimension_semantics<parallel>], iteration_bounds = array<i64: 1>, scalar_prefetch = 0 : i64, scratch_operands = 0 : i64, tpu.core_type = #tpu.core_type<tc>, window_params = [{transform_indices = @transform_0, window_bounds = array<i64: 2, 16, 64>}, {pipeline_mode = #tpu.pipeline_mode<synchronous>, transform_indices = @transform_1, window_bounds = array<i64: 64, 32>}, {pipeline_mode = #tpu.pipeline_mode<synchronous>, transform_indices = @transform_2, window_bounds = array<i64: 1, 32>}, {pipeline_mode = #tpu.pipeline_mode<synchronous>, transform_indices = @transform_3, window_bounds = array<i64: 1, 32>}, {pipeline_mode = #tpu.pipeline_mode<synchronous>, transform_indices = @transform_4, window_bounds = array<i64: 1, 32>}, {pipeline_mode = #tpu.pipeline_mode<synchronous>, transform_indices = @transform_5, window_bounds = array<i64: 32, 32>}, {pipeline_mode = #tpu.pipeline_mode<synchronous>, transform_indices = @transform_6, window_bounds = array<i64: 1, 32>}, {pipeline_mode = #tpu.pipeline_mode<synchronous>, transform_indices = @transform_7, window_bounds = array<i64: 32, 32>}, {pipeline_mode = #tpu.pipeline_mode<synchronous>, transform_indices = @transform_8, window_bounds = array<i64: 1, 32>}, {pipeline_mode = #tpu.pipeline_mode<synchronous>, transform_indices = @transform_9, window_bounds = array<i64: 32, 32>}, {pipeline_mode = #tpu.pipeline_mode<synchronous>, transform_indices = @transform_10, window_bounds = array<i64: 1, 32>}, {pipeline_mode = #tpu.pipeline_mode<synchronous>, transform_indices = @transform_11, window_bounds = array<i64: 16, 32>}, {pipeline_mode = #tpu.pipeline_mode<synchronous>, transform_indices = @transform_12, window_bounds = array<i64: 32, 16>}, {pipeline_mode = #tpu.pipeline_mode<synchronous>, transform_indices = @transform_13, window_bounds = array<i64: 32, 32>}, {pipeline_mode = #tpu.pipeline_mode<synchronous>, transform_indices = @transform_14, window_bounds = array<i64: 32, 32>}, {pipeline_mode = #tpu.pipeline_mode<synchronous>, transform_indices = @transform_15, window_bounds = array<i64: 1, 32>}, {pipeline_mode = #tpu.pipeline_mode<synchronous>, transform_indices = @transform_16, window_bounds = array<i64: 1, 32>}, {pipeline_mode = #tpu.pipeline_mode<synchronous>, transform_indices = @transform_17, window_bounds = array<i64: 1, 32>}, {pipeline_mode = #tpu.pipeline_mode<synchronous>, transform_indices = @transform_18, window_bounds = array<i64: 32, 64>}, {pipeline_mode = #tpu.pipeline_mode<synchronous>, transform_indices = @transform_19, window_bounds = array<i64: 1, 64>}, {pipeline_mode = #tpu.pipeline_mode<synchronous>, transform_indices = @transform_20, window_bounds = array<i64: 1, 64>}, {pipeline_mode = #tpu.pipeline_mode<synchronous>, transform_indices = @transform_21, window_bounds = array<i64: 1, 64>}, {transform_indices = @transform_22, window_bounds = array<i64: 2, 16, 64>}]} {
    %c0 = arith.constant 0 : index
    %c0_0 = arith.constant 0 : index
    %c0_1 = arith.constant 0 : index
    %0 = vector.load %arg1[%c0, %c0_0, %c0_1] : memref<2x16x64xf32, #tpu.memory_space<vmem>>, vector<2x16x64xf32>
    %1 = vector.shape_cast %0 : vector<2x16x64xf32> to vector<32x64xf32>
    %2 = arith.truncf %1 : vector<32x64xf32> to vector<32x64xbf16>
    %c0_2 = arith.constant 0 : index
    %c0_3 = arith.constant 0 : index
    %3 = vector.load %arg2[%c0_2, %c0_3] : memref<64x32xbf16, #tpu.memory_space<vmem>>, vector<64x32xbf16>
    %cst = arith.constant dense<0.000000e+00> : vector<32x32xf32>
    %4 = tpu.matmul %2, %3, %cst {dimension_numbers = #tpu.dot_dimension_numbers<[1], [0], [0], [1], [0, 0, 1, 1], [], []>} : vector<32x64xbf16>, vector<64x32xbf16>, vector<32x32xf32> -> vector<32x32xf32>
    %c0_4 = arith.constant 0 : index
    %c0_5 = arith.constant 0 : index
    %5 = vector.load %arg3[%c0_4, %c0_5] : memref<1x32xf32, #tpu.memory_space<vmem>>, vector<1x32xf32>
    %6 = vector.broadcast %5 : vector<1x32xf32> to vector<32x32xf32>
    %7 = arith.addf %4, %6 : vector<32x32xf32>
    %c0_6 = arith.constant 0 : index
    %c0_7 = arith.constant 0 : index
    %8 = vector.load %arg4[%c0_6, %c0_7] : memref<1x32xf32, #tpu.memory_space<vmem>>, vector<1x32xf32>
    %c0_8 = arith.constant 0 : index
    %c0_9 = arith.constant 0 : index
    %9 = vector.load %arg5[%c0_8, %c0_9] : memref<1x32xf32, #tpu.memory_space<vmem>>, vector<1x32xf32>
    %cst_10 = arith.constant dense<0.000000e+00> : vector<32xf32>
    %10 = vector.multi_reduction <add>, %7, %cst_10 [1] : vector<32x32xf32> to vector<32xf32>
    %11 = vector.shape_cast %10 : vector<32xf32> to vector<32x1xf32>
    %cst_11 = arith.constant 3.200000e+01 : f32
    %12 = vector.broadcast %cst_11 : f32 to vector<32x1xf32>
    %13 = arith.divf %11, %12 : vector<32x1xf32>
    %14 = vector.broadcast %13 : vector<32x1xf32> to vector<32x32xf32>
    %15 = arith.subf %7, %14 : vector<32x32xf32>
    %16 = arith.mulf %15, %15 : vector<32x32xf32>
    %cst_12 = arith.constant dense<0.000000e+00> : vector<32xf32>
    %17 = vector.multi_reduction <add>, %16, %cst_12 [1] : vector<32x32xf32> to vector<32xf32>
    %18 = vector.shape_cast %17 : vector<32xf32> to vector<32x1xf32>
    %cst_13 = arith.constant 3.200000e+01 : f32
    %19 = vector.broadcast %cst_13 : f32 to vector<32x1xf32>
    %20 = arith.divf %18, %19 : vector<32x1xf32>
    %21 = vector.broadcast %13 : vector<32x1xf32> to vector<32x32xf32>
    %22 = arith.subf %7, %21 : vector<32x32xf32>
    %cst_14 = arith.constant 9.99999974E-6 : f32
    %23 = vector.broadcast %cst_14 : f32 to vector<32x1xf32>
    %24 = arith.addf %20, %23 : vector<32x1xf32>
    %25 = math.rsqrt %24 : vector<32x1xf32>
    %26 = vector.broadcast %25 : vector<32x1xf32> to vector<32x32xf32>
    %27 = arith.mulf %22, %26 : vector<32x32xf32>
    %28 = vector.broadcast %8 : vector<1x32xf32> to vector<32x32xf32>
    %29 = arith.mulf %27, %28 : vector<32x32xf32>
    %30 = vector.broadcast %9 : vector<1x32xf32> to vector<32x32xf32>
    %31 = arith.addf %29, %30 : vector<32x32xf32>
    %cst_15 = arith.constant 5.000000e-01 : f32
    %32 = vector.broadcast %cst_15 : f32 to vector<32x32xf32>
    %33 = arith.mulf %32, %31 : vector<32x32xf32>
    %cst_16 = arith.constant 0.707106769 : f32
    %34 = vector.broadcast %cst_16 : f32 to vector<32x32xf32>
    %35 = arith.mulf %31, %34 : vector<32x32xf32>
    %36 = math.erf %35 : vector<32x32xf32>
    %cst_17 = arith.constant 1.000000e+00 : f32
    %37 = vector.broadcast %cst_17 : f32 to vector<32x32xf32>
    %38 = arith.addf %37, %36 : vector<32x32xf32>
    %39 = arith.mulf %33, %38 : vector<32x32xf32>
    %40 = arith.truncf %39 : vector<32x32xf32> to vector<32x32xbf16>
    %c0_18 = arith.constant 0 : index
    %c0_19 = arith.constant 0 : index
    %41 = vector.load %arg10[%c0_18, %c0_19] : memref<32x32xbf16, #tpu.memory_space<vmem>>, vector<32x32xbf16>
    %cst_20 = arith.constant dense<0.000000e+00> : vector<32x32xf32>
    %42 = tpu.matmul %40, %41, %cst_20 {dimension_numbers = #tpu.dot_dimension_numbers<[1], [0], [0], [1], [0, 0, 1, 1], [], []>} : vector<32x32xbf16>, vector<32x32xbf16>, vector<32x32xf32> -> vector<32x32xf32>
    %c0_21 = arith.constant 0 : index
    %c0_22 = arith.constant 0 : index
    %43 = vector.load %arg11[%c0_21, %c0_22] : memref<1x32xf32, #tpu.memory_space<vmem>>, vector<1x32xf32>
    %44 = vector.broadcast %43 : vector<1x32xf32> to vector<32x32xf32>
    %45 = arith.addf %42, %44 : vector<32x32xf32>
    %c0_23 = arith.constant 0 : index
    %c0_24 = arith.constant 0 : index
    %46 = vector.load %arg6[%c0_23, %c0_24] : memref<32x32xbf16, #tpu.memory_space<vmem>>, vector<32x32xbf16>
    %cst_25 = arith.constant dense<0.000000e+00> : vector<32x32xf32>
    %47 = tpu.matmul %40, %46, %cst_25 {dimension_numbers = #tpu.dot_dimension_numbers<[1], [0], [0], [1], [0, 0, 1, 1], [], []>} : vector<32x32xbf16>, vector<32x32xbf16>, vector<32x32xf32> -> vector<32x32xf32>
    %c0_26 = arith.constant 0 : index
    %c0_27 = arith.constant 0 : index
    %48 = vector.load %arg7[%c0_26, %c0_27] : memref<1x32xf32, #tpu.memory_space<vmem>>, vector<1x32xf32>
    %49 = vector.broadcast %48 : vector<1x32xf32> to vector<32x32xf32>
    %50 = arith.addf %47, %49 : vector<32x32xf32>
    %c0_28 = arith.constant 0 : index
    %c0_29 = arith.constant 0 : index
    %51 = vector.load %arg8[%c0_28, %c0_29] : memref<32x32xbf16, #tpu.memory_space<vmem>>, vector<32x32xbf16>
    %cst_30 = arith.constant dense<0.000000e+00> : vector<32x32xf32>
    %52 = tpu.matmul %40, %51, %cst_30 {dimension_numbers = #tpu.dot_dimension_numbers<[1], [0], [0], [1], [0, 0, 1, 1], [], []>} : vector<32x32xbf16>, vector<32x32xbf16>, vector<32x32xf32> -> vector<32x32xf32>
    %c0_31 = arith.constant 0 : index
    %c0_32 = arith.constant 0 : index
    %53 = vector.load %arg9[%c0_31, %c0_32] : memref<1x32xf32, #tpu.memory_space<vmem>>, vector<1x32xf32>
    %54 = vector.broadcast %53 : vector<1x32xf32> to vector<32x32xf32>
    %55 = arith.addf %52, %54 : vector<32x32xf32>
    %c0_33 = arith.constant 0 : index
    %c0_34 = arith.constant 0 : index
    %56 = vector.load %arg14[%c0_33, %c0_34] : memref<32x32xf32, #tpu.memory_space<vmem>>, vector<32x32xf32>
    %cst_35 = arith.constant dense<0xFF800000> : vector<32xf32>
    %57 = vector.multi_reduction <maximumf>, %50, %cst_35 [1] : vector<32x32xf32> to vector<32xf32>
    %58 = vector.shape_cast %57 : vector<32xf32> to vector<32x1xf32>
    %59 = vector.broadcast %58 : vector<32x1xf32> to vector<32x32xf32>
    %60 = arith.subf %50, %59 : vector<32x32xf32>
    %61 = math.exp %60 : vector<32x32xf32>
    %cst_36 = arith.constant dense<0.000000e+00> : vector<32x32xf32>
    %62 = tpu.matmul %61, %56, %cst_36 {dimension_numbers = #tpu.dot_dimension_numbers<[1], [0], [0], [1], [0, 0, 1, 1], [], []>} : vector<32x32xf32>, vector<32x32xf32>, vector<32x32xf32> -> vector<32x32xf32>
    %63 = arith.divf %61, %62 : vector<32x32xf32>
    %64 = vector.shape_cast %55 : vector<32x32xf32> to vector<2x16x32xf32>
    %cst_37 = arith.constant dense<0xFF800000> : vector<2x32xf32>
    %65 = vector.multi_reduction <maximumf>, %64, %cst_37 [1] : vector<2x16x32xf32> to vector<2x32xf32>
    %66 = vector.shape_cast %65 : vector<2x32xf32> to vector<2x1x32xf32>
    %67 = vector.broadcast %66 : vector<2x1x32xf32> to vector<2x16x32xf32>
    %68 = arith.subf %64, %67 : vector<2x16x32xf32>
    %69 = math.exp %68 : vector<2x16x32xf32>
    %cst_38 = arith.constant dense<0.000000e+00> : vector<2x32xf32>
    %70 = vector.multi_reduction <add>, %69, %cst_38 [1] : vector<2x16x32xf32> to vector<2x32xf32>
    %71 = vector.shape_cast %70 : vector<2x32xf32> to vector<2x1x32xf32>
    %72 = vector.broadcast %71 : vector<2x1x32xf32> to vector<2x16x32xf32>
    %73 = arith.divf %69, %72 : vector<2x16x32xf32>
    %74 = vector.shape_cast %45 : vector<32x32xf32> to vector<2x16x32xf32>
    %75 = vector.shape_cast %63 : vector<32x32xf32> to vector<2x16x32xf32>
    %76 = arith.truncf %73 : vector<2x16x32xf32> to vector<2x16x32xbf16>
    %77 = arith.truncf %74 : vector<2x16x32xf32> to vector<2x16x32xbf16>
    "tpu.trace_start"() <{level = 10 : i32, message = "bnd,bne->bde"}> : () -> ()
    %cst_39 = arith.constant dense<0.000000e+00> : vector<2x32x32xf32>
    %78 = tpu.matmul %76, %77, %cst_39 {dimension_numbers = #tpu.dot_dimension_numbers<[1], [1], [2], [2], [0, 0, 0, 2, 1, 2], [0], [0]>} : vector<2x16x32xbf16>, vector<2x16x32xbf16>, vector<2x32x32xf32> -> vector<2x32x32xf32>
    "tpu.trace_stop"() : () -> ()
    %79 = vector.shape_cast %56 : vector<32x32xf32> to vector<1x32x32xf32>
    %80 = vector.broadcast %79 : vector<1x32x32xf32> to vector<2x32x32xf32>
    %81 = arith.mulf %78, %80 : vector<2x32x32xf32>
    %82 = arith.truncf %75 : vector<2x16x32xf32> to vector<2x16x32xbf16>
    %83 = arith.truncf %81 : vector<2x32x32xf32> to vector<2x32x32xbf16>
    "tpu.trace_start"() <{level = 10 : i32, message = "bnd,bde->bne"}> : () -> ()
    %cst_40 = arith.constant dense<0.000000e+00> : vector<2x16x32xf32>
    %84 = tpu.matmul %82, %83, %cst_40 {dimension_numbers = #tpu.dot_dimension_numbers<[2], [1], [1], [2], [0, 0, 0, 1, 1, 2], [0], [0]>} : vector<2x16x32xbf16>, vector<2x32x32xbf16>, vector<2x16x32xf32> -> vector<2x16x32xf32>
    "tpu.trace_stop"() : () -> ()
    %c0_41 = arith.constant 0 : index
    %c0_42 = arith.constant 0 : index
    %85 = vector.load %arg13[%c0_41, %c0_42] : memref<32x16xbf16, #tpu.memory_space<vmem>>, vector<32x16xbf16>
    %86 = vector.shape_cast %85 : vector<32x16xbf16> to vector<1x32x16xbf16>
    %87 = vector.broadcast %86 : vector<1x32x16xbf16> to vector<2x32x16xbf16>
    %88 = arith.truncf %74 : vector<2x16x32xf32> to vector<2x16x32xbf16>
    "tpu.trace_start"() <{level = 10 : i32, message = "bdn,bne->bde"}> : () -> ()
    %cst_43 = arith.constant dense<0.000000e+00> : vector<2x32x32xf32>
    %89 = tpu.matmul %87, %88, %cst_43 {dimension_numbers = #tpu.dot_dimension_numbers<[2], [1], [1], [2], [0, 0, 0, 1, 1, 2], [0], [0]>} : vector<2x32x16xbf16>, vector<2x16x32xbf16>, vector<2x32x32xf32> -> vector<2x32x32xf32>
    "tpu.trace_stop"() : () -> ()
    %90 = vector.shape_cast %56 : vector<32x32xf32> to vector<1x32x32xf32>
    %91 = vector.broadcast %90 : vector<1x32x32xf32> to vector<2x32x32xf32>
    %92 = arith.mulf %89, %91 : vector<2x32x32xf32>
    %c0_44 = arith.constant 0 : index
    %c0_45 = arith.constant 0 : index
    %93 = vector.load %arg12[%c0_44, %c0_45] : memref<16x32xbf16, #tpu.memory_space<vmem>>, vector<16x32xbf16>
    %94 = vector.shape_cast %93 : vector<16x32xbf16> to vector<1x16x32xbf16>
    %95 = vector.broadcast %94 : vector<1x16x32xbf16> to vector<2x16x32xbf16>
    %96 = arith.truncf %92 : vector<2x32x32xf32> to vector<2x32x32xbf16>
    "tpu.trace_start"() <{level = 10 : i32, message = "bnd,bde->bne"}> : () -> ()
    %cst_46 = arith.constant dense<0.000000e+00> : vector<2x16x32xf32>
    %97 = tpu.matmul %95, %96, %cst_46 {dimension_numbers = #tpu.dot_dimension_numbers<[2], [1], [1], [2], [0, 0, 0, 1, 1, 2], [0], [0]>} : vector<2x16x32xbf16>, vector<2x32x32xbf16>, vector<2x16x32xf32> -> vector<2x16x32xf32>
    "tpu.trace_stop"() : () -> ()
    %98 = arith.addf %84, %97 : vector<2x16x32xf32>
    %99 = vector.shape_cast %98 : vector<2x16x32xf32> to vector<32x32xf32>
    %100 = arith.truncf %99 : vector<32x32xf32> to vector<32x32xbf16>
    %c0_47 = arith.constant 0 : index
    %c0_48 = arith.constant 0 : index
    %101 = vector.load %arg15[%c0_47, %c0_48] : memref<32x32xbf16, #tpu.memory_space<vmem>>, vector<32x32xbf16>
    %cst_49 = arith.constant dense<0.000000e+00> : vector<32x32xf32>
    %102 = tpu.matmul %100, %101, %cst_49 {dimension_numbers = #tpu.dot_dimension_numbers<[1], [0], [0], [1], [0, 0, 1, 1], [], []>} : vector<32x32xbf16>, vector<32x32xbf16>, vector<32x32xf32> -> vector<32x32xf32>
    %c0_50 = arith.constant 0 : index
    %c0_51 = arith.constant 0 : index
    %103 = vector.load %arg16[%c0_50, %c0_51] : memref<1x32xf32, #tpu.memory_space<vmem>>, vector<1x32xf32>
    %104 = vector.broadcast %103 : vector<1x32xf32> to vector<32x32xf32>
    %105 = arith.addf %102, %104 : vector<32x32xf32>
    %c0_52 = arith.constant 0 : index
    %c0_53 = arith.constant 0 : index
    %106 = vector.load %arg17[%c0_52, %c0_53] : memref<1x32xf32, #tpu.memory_space<vmem>>, vector<1x32xf32>
    %c0_54 = arith.constant 0 : index
    %c0_55 = arith.constant 0 : index
    %107 = vector.load %arg18[%c0_54, %c0_55] : memref<1x32xf32, #tpu.memory_space<vmem>>, vector<1x32xf32>
    %cst_56 = arith.constant dense<0.000000e+00> : vector<32xf32>
    %108 = vector.multi_reduction <add>, %105, %cst_56 [1] : vector<32x32xf32> to vector<32xf32>
    %109 = vector.shape_cast %108 : vector<32xf32> to vector<32x1xf32>
    %cst_57 = arith.constant 3.200000e+01 : f32
    %110 = vector.broadcast %cst_57 : f32 to vector<32x1xf32>
    %111 = arith.divf %109, %110 : vector<32x1xf32>
    %112 = vector.broadcast %111 : vector<32x1xf32> to vector<32x32xf32>
    %113 = arith.subf %105, %112 : vector<32x32xf32>
    %114 = arith.mulf %113, %113 : vector<32x32xf32>
    %cst_58 = arith.constant dense<0.000000e+00> : vector<32xf32>
    %115 = vector.multi_reduction <add>, %114, %cst_58 [1] : vector<32x32xf32> to vector<32xf32>
    %116 = vector.shape_cast %115 : vector<32xf32> to vector<32x1xf32>
    %cst_59 = arith.constant 3.200000e+01 : f32
    %117 = vector.broadcast %cst_59 : f32 to vector<32x1xf32>
    %118 = arith.divf %116, %117 : vector<32x1xf32>
    %119 = vector.broadcast %111 : vector<32x1xf32> to vector<32x32xf32>
    %120 = arith.subf %105, %119 : vector<32x32xf32>
    %cst_60 = arith.constant 9.99999974E-6 : f32
    %121 = vector.broadcast %cst_60 : f32 to vector<32x1xf32>
    %122 = arith.addf %118, %121 : vector<32x1xf32>
    %123 = math.rsqrt %122 : vector<32x1xf32>
    %124 = vector.broadcast %123 : vector<32x1xf32> to vector<32x32xf32>
    %125 = arith.mulf %120, %124 : vector<32x32xf32>
    %126 = vector.broadcast %106 : vector<1x32xf32> to vector<32x32xf32>
    %127 = arith.mulf %125, %126 : vector<32x32xf32>
    %128 = vector.broadcast %107 : vector<1x32xf32> to vector<32x32xf32>
    %129 = arith.addf %127, %128 : vector<32x32xf32>
    %cst_61 = arith.constant 5.000000e-01 : f32
    %130 = vector.broadcast %cst_61 : f32 to vector<32x32xf32>
    %131 = arith.mulf %130, %129 : vector<32x32xf32>
    %cst_62 = arith.constant 0.707106769 : f32
    %132 = vector.broadcast %cst_62 : f32 to vector<32x32xf32>
    %133 = arith.mulf %129, %132 : vector<32x32xf32>
    %134 = math.erf %133 : vector<32x32xf32>
    %cst_63 = arith.constant 1.000000e+00 : f32
    %135 = vector.broadcast %cst_63 : f32 to vector<32x32xf32>
    %136 = arith.addf %135, %134 : vector<32x32xf32>
    %137 = arith.mulf %131, %136 : vector<32x32xf32>
    %138 = arith.truncf %137 : vector<32x32xf32> to vector<32x32xbf16>
    %c0_64 = arith.constant 0 : index
    %c0_65 = arith.constant 0 : index
    %139 = vector.load %arg19[%c0_64, %c0_65] : memref<32x64xbf16, #tpu.memory_space<vmem>>, vector<32x64xbf16>
    %cst_66 = arith.constant dense<0.000000e+00> : vector<32x64xf32>
    %140 = tpu.matmul %138, %139, %cst_66 {dimension_numbers = #tpu.dot_dimension_numbers<[1], [0], [0], [1], [0, 0, 1, 1], [], []>} : vector<32x32xbf16>, vector<32x64xbf16>, vector<32x64xf32> -> vector<32x64xf32>
    %c0_67 = arith.constant 0 : index
    %c0_68 = arith.constant 0 : index
    %141 = vector.load %arg20[%c0_67, %c0_68] : memref<1x64xf32, #tpu.memory_space<vmem>>, vector<1x64xf32>
    %142 = vector.broadcast %141 : vector<1x64xf32> to vector<32x64xf32>
    %143 = arith.addf %140, %142 : vector<32x64xf32>
    %c0_69 = arith.constant 0 : index
    %c0_70 = arith.constant 0 : index
    %144 = vector.load %arg21[%c0_69, %c0_70] : memref<1x64xf32, #tpu.memory_space<vmem>>, vector<1x64xf32>
    %c0_71 = arith.constant 0 : index
    %c0_72 = arith.constant 0 : index
    %145 = vector.load %arg22[%c0_71, %c0_72] : memref<1x64xf32, #tpu.memory_space<vmem>>, vector<1x64xf32>
    %cst_73 = arith.constant dense<0.000000e+00> : vector<32xf32>
    %146 = vector.multi_reduction <add>, %143, %cst_73 [1] : vector<32x64xf32> to vector<32xf32>
    %147 = vector.shape_cast %146 : vector<32xf32> to vector<32x1xf32>
    %cst_74 = arith.constant 6.400000e+01 : f32
    %148 = vector.broadcast %cst_74 : f32 to vector<32x1xf32>
    %149 = arith.divf %147, %148 : vector<32x1xf32>
    %150 = vector.broadcast %149 : vector<32x1xf32> to vector<32x64xf32>
    %151 = arith.subf %143, %150 : vector<32x64xf32>
    %152 = arith.mulf %151, %151 : vector<32x64xf32>
    %cst_75 = arith.constant dense<0.000000e+00> : vector<32xf32>
    %153 = vector.multi_reduction <add>, %152, %cst_75 [1] : vector<32x64xf32> to vector<32xf32>
    %154 = vector.shape_cast %153 : vector<32xf32> to vector<32x1xf32>
    %cst_76 = arith.constant 6.400000e+01 : f32
    %155 = vector.broadcast %cst_76 : f32 to vector<32x1xf32>
    %156 = arith.divf %154, %155 : vector<32x1xf32>
    %157 = vector.broadcast %149 : vector<32x1xf32> to vector<32x64xf32>
    %158 = arith.subf %143, %157 : vector<32x64xf32>
    %cst_77 = arith.constant 9.99999974E-6 : f32
    %159 = vector.broadcast %cst_77 : f32 to vector<32x1xf32>
    %160 = arith.addf %156, %159 : vector<32x1xf32>
    %161 = math.rsqrt %160 : vector<32x1xf32>
    %162 = vector.broadcast %161 : vector<32x1xf32> to vector<32x64xf32>
    %163 = arith.mulf %158, %162 : vector<32x64xf32>
    %164 = vector.broadcast %144 : vector<1x64xf32> to vector<32x64xf32>
    %165 = arith.mulf %163, %164 : vector<32x64xf32>
    %166 = vector.broadcast %145 : vector<1x64xf32> to vector<32x64xf32>
    %167 = arith.addf %165, %166 : vector<32x64xf32>
    %168 = arith.addf %1, %167 : vector<32x64xf32>
    %cst_78 = arith.constant 5.000000e-01 : f32
    %169 = vector.broadcast %cst_78 : f32 to vector<32x64xf32>
    %170 = arith.mulf %169, %168 : vector<32x64xf32>
    %cst_79 = arith.constant 0.707106769 : f32
    %171 = vector.broadcast %cst_79 : f32 to vector<32x64xf32>
    %172 = arith.mulf %168, %171 : vector<32x64xf32>
    %173 = math.erf %172 : vector<32x64xf32>
    %cst_80 = arith.constant 1.000000e+00 : f32
    %174 = vector.broadcast %cst_80 : f32 to vector<32x64xf32>
    %175 = arith.addf %174, %173 : vector<32x64xf32>
    %176 = arith.mulf %170, %175 : vector<32x64xf32>
    %177 = vector.shape_cast %176 : vector<32x64xf32> to vector<2x16x64xf32>
    %c0_81 = arith.constant 0 : index
    %c0_82 = arith.constant 0 : index
    %c0_83 = arith.constant 0 : index
    %178 = vector.load %arg23[%c0_81, %c0_82, %c0_83] : memref<2x16x64xf32, #tpu.memory_space<vmem>>, vector<2x16x64xf32>
    tpu.vector_store %arg23[%c0_81, %c0_82, %c0_83], %177 {strides = array<i32>} : memref<2x16x64xf32, #tpu.memory_space<vmem>>, vector<2x16x64xf32>,
    return
  }
  func.func @transform_0(%arg0: i32) -> (i32, i32, i32) {
    %c0_i32 = arith.constant 0 : i32
    %c0_i32_0 = arith.constant 0 : i32
    %c0_i32_1 = arith.constant 0 : i32
    return %arg0, %c0_i32, %c0_i32_0 : i32, i32, i32
  }
  func.func @transform_1(%arg0: i32) -> (i32, i32) {
    %c0_i32 = arith.constant 0 : i32
    %c0_i32_0 = arith.constant 0 : i32
    %c0_i32_1 = arith.constant 0 : i32
    return %c0_i32, %c0_i32_0 : i32, i32
  }
  func.func @transform_2(%arg0: i32) -> (i32, i32) {
    %c0_i32 = arith.constant 0 : i32
    %c0_i32_0 = arith.constant 0 : i32
    %c0_i32_1 = arith.constant 0 : i32
    return %c0_i32, %c0_i32_0 : i32, i32
  }
  func.func @transform_3(%arg0: i32) -> (i32, i32) {
    %c0_i32 = arith.constant 0 : i32
    %c0_i32_0 = arith.constant 0 : i32
    %c0_i32_1 = arith.constant 0 : i32
    return %c0_i32, %c0_i32_0 : i32, i32
  }
  func.func @transform_4(%arg0: i32) -> (i32, i32) {
    %c0_i32 = arith.constant 0 : i32
    %c0_i32_0 = arith.constant 0 : i32
    %c0_i32_1 = arith.constant 0 : i32
    return %c0_i32, %c0_i32_0 : i32, i32
  }
  func.func @transform_5(%arg0: i32) -> (i32, i32) {
    %c0_i32 = arith.constant 0 : i32
    %c0_i32_0 = arith.constant 0 : i32
    %c0_i32_1 = arith.constant 0 : i32
    return %c0_i32, %c0_i32_0 : i32, i32
  }
  func.func @transform_6(%arg0: i32) -> (i32, i32) {
    %c0_i32 = arith.constant 0 : i32
    %c0_i32_0 = arith.constant 0 : i32
    %c0_i32_1 = arith.constant 0 : i32
    return %c0_i32, %c0_i32_0 : i32, i32
  }
  func.func @transform_7(%arg0: i32) -> (i32, i32) {
    %c0_i32 = arith.constant 0 : i32
    %c0_i32_0 = arith.constant 0 : i32
    %c0_i32_1 = arith.constant 0 : i32
    return %c0_i32, %c0_i32_0 : i32, i32
  }
  func.func @transform_8(%arg0: i32) -> (i32, i32) {
    %c0_i32 = arith.constant 0 : i32
    %c0_i32_0 = arith.constant 0 : i32
    %c0_i32_1 = arith.constant 0 : i32
    return %c0_i32, %c0_i32_0 : i32, i32
  }
  func.func @transform_9(%arg0: i32) -> (i32, i32) {
    %c0_i32 = arith.constant 0 : i32
    %c0_i32_0 = arith.constant 0 : i32
    %c0_i32_1 = arith.constant 0 : i32
    return %c0_i32, %c0_i32_0 : i32, i32
  }
  func.func @transform_10(%arg0: i32) -> (i32, i32) {
    %c0_i32 = arith.constant 0 : i32
    %c0_i32_0 = arith.constant 0 : i32
    %c0_i32_1 = arith.constant 0 : i32
    return %c0_i32, %c0_i32_0 : i32, i32
  }
  func.func @transform_11(%arg0: i32) -> (i32, i32) {
    %c0_i32 = arith.constant 0 : i32
    %c0_i32_0 = arith.constant 0 : i32
    %c0_i32_1 = arith.constant 0 : i32
    return %c0_i32, %c0_i32_0 : i32, i32
  }
  func.func @transform_12(%arg0: i32) -> (i32, i32) {
    %c0_i32 = arith.constant 0 : i32
    %c0_i32_0 = arith.constant 0 : i32
    %c0_i32_1 = arith.constant 0 : i32
    return %c0_i32, %c0_i32_0 : i32, i32
  }
  func.func @transform_13(%arg0: i32) -> (i32, i32) {
    %c0_i32 = arith.constant 0 : i32
    %c0_i32_0 = arith.constant 0 : i32
    %c0_i32_1 = arith.constant 0 : i32
    return %c0_i32, %c0_i32_0 : i32, i32
  }
  func.func @transform_14(%arg0: i32) -> (i32, i32) {
    %c0_i32 = arith.constant 0 : i32
    %c0_i32_0 = arith.constant 0 : i32
    %c0_i32_1 = arith.constant 0 : i32
    return %c0_i32, %c0_i32_0 : i32, i32
  }
  func.func @transform_15(%arg0: i32) -> (i32, i32) {
    %c0_i32 = arith.constant 0 : i32
    %c0_i32_0 = arith.constant 0 : i32
    %c0_i32_1 = arith.constant 0 : i32
    return %c0_i32, %c0_i32_0 : i32, i32
  }
  func.func @transform_16(%arg0: i32) -> (i32, i32) {
    %c0_i32 = arith.constant 0 : i32
    %c0_i32_0 = arith.constant 0 : i32
    %c0_i32_1 = arith.constant 0 : i32
    return %c0_i32, %c0_i32_0 : i32, i32
  }
  func.func @transform_17(%arg0: i32) -> (i32, i32) {
    %c0_i32 = arith.constant 0 : i32
    %c0_i32_0 = arith.constant 0 : i32
    %c0_i32_1 = arith.constant 0 : i32
    return %c0_i32, %c0_i32_0 : i32, i32
  }
  func.func @transform_18(%arg0: i32) -> (i32, i32) {
    %c0_i32 = arith.constant 0 : i32
    %c0_i32_0 = arith.constant 0 : i32
    %c0_i32_1 = arith.constant 0 : i32
    return %c0_i32, %c0_i32_0 : i32, i32
  }
  func.func @transform_19(%arg0: i32) -> (i32, i32) {
    %c0_i32 = arith.constant 0 : i32
    %c0_i32_0 = arith.constant 0 : i32
    %c0_i32_1 = arith.constant 0 : i32
    return %c0_i32, %c0_i32_0 : i32, i32
  }
  func.func @transform_20(%arg0: i32) -> (i32, i32) {
    %c0_i32 = arith.constant 0 : i32
    %c0_i32_0 = arith.constant 0 : i32
    %c0_i32_1 = arith.constant 0 : i32
    return %c0_i32, %c0_i32_0 : i32, i32
  }
  func.func @transform_21(%arg0: i32) -> (i32, i32) {
    %c0_i32 = arith.constant 0 : i32
    %c0_i32_0 = arith.constant 0 : i32
    %c0_i32_1 = arith.constant 0 : i32
    return %c0_i32, %c0_i32_0 : i32, i32
  }
  func.func @transform_22(%arg0: i32) -> (i32, i32, i32) {
    %c0_i32 = arith.constant 0 : i32
    %c0_i32_0 = arith.constant 0 : i32
    %c0_i32_1 = arith.constant 0 : i32
    return %arg0, %c0_i32, %c0_i32_0 : i32, i32, i32
  }
}

</mosaic_0001>

<llo_original>
// kernel: tpu_custom_call.1
$region0: #{tpu_custom_call.1}
  #allocation0 [shape = 'u32[]', space=smem, size = 0x4, offset = 0x4, fixed_abs, tag = 'smem constant byte address 0x4 - core index']
  #allocation1 [shape = 'u32[144,128]{1,0:T(1,128)}', space=vmem, size = 0x12000, scoped, tag = 'internal scratch']
  %s0 = inlined_call_operand.vmem [shape: f32[2,16,64], index: 0, kind: input, shape index: {}]
  %s1 = inlined_call_operand.vmem [shape: bf16[64,32], index: 1, kind: input, shape index: {}]
  %s2 = inlined_call_operand.vmem [shape: f32[1,32], index: 2, kind: input, shape index: {}]
  %s3 = inlined_call_operand.hbm [shape: f32[1,32], index: 3, kind: input, shape index: {}]
  %s4 = inlined_call_operand.hbm [shape: f32[1,32], index: 4, kind: input, shape index: {}]
  %s5 = inlined_call_operand.vmem [shape: bf16[32,32], index: 5, kind: input, shape index: {}]
  %s6 = inlined_call_operand.hbm [shape: f32[1,32], index: 6, kind: input, shape index: {}]
  %s7 = inlined_call_operand.hbm [shape: bf16[32,32], index: 7, kind: input, shape index: {}]
  %s8 = inlined_call_operand.hbm [shape: f32[1,32], index: 8, kind: input, shape index: {}]
  %s9 = inlined_call_operand.hbm [shape: bf16[32,32], index: 9, kind: input, shape index: {}]
  %s10 = inlined_call_operand.hbm [shape: f32[1,32], index: 10, kind: input, shape index: {}]
  %s11 = inlined_call_operand.hbm [shape: bf16[16,32], index: 11, kind: input, shape index: {}]
  %s12 = inlined_call_operand.vmem [shape: bf16[32,16], index: 12, kind: input, shape index: {}]
  %s13 = inlined_call_operand.vmem [shape: f32[32,32], index: 13, kind: input, shape index: {}]
  %s14 = inlined_call_operand.vmem [shape: bf16[32,32], index: 14, kind: input, shape index: {}]
  %s15 = inlined_call_operand.vmem [shape: f32[1,32], index: 15, kind: input, shape index: {}]
  %s16 = inlined_call_operand.vmem [shape: f32[1,32], index: 16, kind: input, shape index: {}]
  %s17 = inlined_call_operand.vmem [shape: f32[1,32], index: 17, kind: input, shape index: {}]
  %s18 = inlined_call_operand.hbm [shape: bf16[32,64], index: 18, kind: input, shape index: {}]
  %s19 = inlined_call_operand.vmem [shape: f32[1,64], index: 19, kind: input, shape index: {}]
  %s20 = inlined_call_operand.vmem [shape: f32[1,64], index: 20, kind: input, shape index: {}]
  %s21 = inlined_call_operand.vmem [shape: f32[1,64], index: 21, kind: input, shape index: {}]
  %s22 = inlined_call_operand.hbm [shape: f32[2,16,64], index: 22, kind: output, shape index: {}]
  %s23 = sld [smem:[#allocation0]]
  $region134: #{tpu_custom_call.1} parent=0
    _
  %s25 = ssub.s32 1, %s23
  %s26 = scalar_select 0, %s25, %s23
  $region1: #{tpu_custom_call.1} parent=0
    #allocation2 [shape = 'u8[512]{0}', space=vmem, size = 0x400, scoped, tag = 'input window, operand 3, single buffered']
    #allocation3 [shape = 's32[1]{0}', space=sflag, size = 0x4, scoped, tag = 'scoped memory for tpu_custom_call.1']
    #allocation4 [shape = 's32[1]{0}', space=sflag, size = 0x4, scoped, tag = 'scoped memory for tpu_custom_call.1']
    #allocation5 [shape = 'u8[512]{0}', space=vmem, size = 0x400, scoped, tag = 'input window, operand 4, single buffered']
    #allocation6 [shape = 's32[1]{0}', space=sflag, size = 0x4, scoped, tag = 'scoped memory for tpu_custom_call.1']
    #allocation7 [shape = 'u8[512]{0}', space=vmem, size = 0x400, scoped, tag = 'input window, operand 6, single buffered']
    #allocation8 [shape = 'u8[8192]{0}', space=vmem, size = 0x2000, scoped, tag = 'input window, operand 7, single buffered']
    #allocation9 [shape = 's32[1]{0}', space=sflag, size = 0x4, scoped, tag = 'scoped memory for tpu_custom_call.1']
    #allocation10 [shape = 'u8[512]{0}', space=vmem, size = 0x400, scoped, tag = 'input window, operand 8, single buffered']
    #allocation11 [shape = 'u8[8192]{0}', space=vmem, size = 0x2000, scoped, tag = 'input window, operand 9, single buffered']
    #allocation12 [shape = 's32[1]{0}', space=sflag, size = 0x4, scoped, tag = 'scoped memory for tpu_custom_call.1']
    #allocation13 [shape = 'u8[512]{0}', space=vmem, size = 0x400, scoped, tag = 'input window, operand 10, single buffered']
    #allocation14 [shape = 'u8[4096]{0}', space=vmem, size = 0x1000, scoped, tag = 'input window, operand 11, single buffered']
    #allocation15 [shape = 's32[1]{0}', space=sflag, size = 0x4, scoped, tag = 'scoped memory for tpu_custom_call.1']
    #allocation16 [shape = 'u8[8192]{0}', space=vmem, size = 0x2000, scoped, tag = 'input window, operand 18, single buffered']
    #allocation17 [shape = 'u8[16384]{0}', space=vmem, size = 0x4000, scoped, tag = 'output window, operand 0, single buffered']
    %27 = vsyncpa [#allocation3], 0
    %28 = vsyncpa [#allocation6], 0
    %29 = vsyncpa [#allocation9], 0
    %30 = vsyncpa [#allocation12], 0
    %31 = vsyncpa [#allocation15], 0
    %32 = vsyncpa [#allocation4], 0
    // Predicated region
    $region2: #{tpu_custom_call.1} parent=1 // pred_check
      _
    $region3: #{tpu_custom_call.1} parent=1 // pred_check_branch
      %34 = sbr.rel (0) target = $region5
    $region4: #{tpu_custom_call.1} parent=1 // pred_region
      _
    $region5: #{tpu_custom_call.1} parent=1 // pred_fallthru
      _
    // Predicated region
    $region6: #{tpu_custom_call.1} parent=1 // pred_check
      _
    $region7: #{tpu_custom_call.1} parent=1 // pred_check_branch
      %36 = sbr.rel (0) target = $region9
    $region8: #{tpu_custom_call.1} parent=1 // pred_region
      _
    $region9: #{tpu_custom_call.1} parent=1 // pred_fallthru
      _
    // Predicated region
    $region10: #{tpu_custom_call.1} parent=1 // pred_check
      _
    $region11: #{tpu_custom_call.1} parent=1 // pred_check_branch
      %38 = sbr.rel (0) target = $region13
    $region12: #{tpu_custom_call.1} parent=1 // pred_region
      _
    $region13: #{tpu_custom_call.1} parent=1 // pred_fallthru
      _
    // Predicated region
    $region14: #{tpu_custom_call.1} parent=1 // pred_check
      _
    $region15: #{tpu_custom_call.1} parent=1 // pred_check_branch
      %40 = sbr.rel (0) target = $region17
    $region16: #{tpu_custom_call.1} parent=1 // pred_region
      %s42 = ssub.s32 16, 16
      %43 = vsyncadd [#allocation3], %s42
      %s45 = sshll.u32 [#allocation2], 4
      %s46 = int_to_ptr.vmem [resolvable:$true] %s45
      %48 = dma.hbm_to_vmem [thread:$0]  %s3, 16, %s46, [#allocation3]
    $region17: #{tpu_custom_call.1} parent=1 // pred_fallthru
      _
    // Predicated region
    $region18: #{tpu_custom_call.1} parent=1 // pred_check
      _
    $region19: #{tpu_custom_call.1} parent=1 // pred_check_branch
      %50 = sbr.rel (0) target = $region21
    $region20: #{tpu_custom_call.1} parent=1 // pred_region
      %s52 = ssub.s32 16, 16
      %53 = vsyncadd [#allocation6], %s52
      %s55 = sshll.u32 [#allocation5], 4
      %s56 = int_to_ptr.vmem [resolvable:$true] %s55
      %58 = dma.hbm_to_vmem [thread:$0]  %s4, 16, %s56, [#allocation6]
    $region21: #{tpu_custom_call.1} parent=1 // pred_fallthru
      _
    // Predicated region
    $region22: #{tpu_custom_call.1} parent=1 // pred_check
      _
    $region23: #{tpu_custom_call.1} parent=1 // pred_check_branch
      %60 = sbr.rel (0) target = $region25
    $region24: #{tpu_custom_call.1} parent=1 // pred_region
      _
    $region25: #{tpu_custom_call.1} parent=1 // pred_fallthru
      _
    // Predicated region
    $region26: #{tpu_custom_call.1} parent=1 // pred_check
      _
    $region27: #{tpu_custom_call.1} parent=1 // pred_check_branch
      %62 = sbr.rel (0) target = $region29
    $region28: #{tpu_custom_call.1} parent=1 // pred_region
      %s64 = ssub.s32 16, 16
      %65 = vsyncadd [#allocation6], %s64
      %s67 = sshll.u32 [#allocation7], 4
      %s68 = int_to_ptr.vmem [resolvable:$true] %s67
      %70 = dma.hbm_to_vmem [thread:$0]  %s6, 16, %s68, [#allocation6]
    $region29: #{tpu_custom_call.1} parent=1 // pred_fallthru
      _
    // Predicated region
    $region30: #{tpu_custom_call.1} parent=1 // pred_check
      _
    $region31: #{tpu_custom_call.1} parent=1 // pred_check_branch
      %72 = sbr.rel (0) target = $region33
    $region32: #{tpu_custom_call.1} parent=1 // pred_region
      %s74 = ssub.s32 256, 256
      %75 = vsyncadd [#allocation9], %s74
      %s76 = sshll.u32 [#allocation8], 4
      %s77 = int_to_ptr.vmem [resolvable:$true] %s76
      %82 = dma.hbm_to_vmem [thread:$0]  %s7, 256, %s77, [#allocation9], 64, 64, 4
    $region33: #{tpu_custom_call.1} parent=1 // pred_fallthru
      _
    // Predicated region
    $region34: #{tpu_custom_call.1} parent=1 // pred_check
      _
    $region35: #{tpu_custom_call.1} parent=1 // pred_check_branch
      %84 = sbr.rel (0) target = $region37
    $region36: #{tpu_custom_call.1} parent=1 // pred_region
      %s86 = ssub.s32 16, 16
      %87 = vsyncadd [#allocation9], %s86
      %s89 = sshll.u32 [#allocation10], 4
      %s90 = int_to_ptr.vmem [resolvable:$true] %s89
      %92 = dma.hbm_to_vmem [thread:$0]  %s8, 16, %s90, [#allocation9]
    $region37: #{tpu_custom_call.1} parent=1 // pred_fallthru
      _
    // Predicated region
    $region38: #{tpu_custom_call.1} parent=1 // pred_check
      _
    $region39: #{tpu_custom_call.1} parent=1 // pred_check_branch
      %94 = sbr.rel (0) target = $region41
    $region40: #{tpu_custom_call.1} parent=1 // pred_region
      %s96 = ssub.s32 256, 256
      %97 = vsyncadd [#allocation12], %s96
      %s98 = sshll.u32 [#allocation11], 4
      %s99 = int_to_ptr.vmem [resolvable:$true] %s98
      %104 = dma.hbm_to_vmem [thread:$0]  %s9, 256, %s99, [#allocation12], 64, 64, 4
    $region41: #{tpu_custom_call.1} parent=1 // pred_fallthru
      _
    // Predicated region
    $region42: #{tpu_custom_call.1} parent=1 // pred_check
      _
    $region43: #{tpu_custom_call.1} parent=1 // pred_check_branch
      %106 = sbr.rel (0) target = $region45
    $region44: #{tpu_custom_call.1} parent=1 // pred_region
      %s108 = ssub.s32 16, 16
      %109 = vsyncadd [#allocation12], %s108
      %s111 = sshll.u32 [#allocation13], 4
      %s112 = int_to_ptr.vmem [resolvable:$true] %s111
      %114 = dma.hbm_to_vmem [thread:$0]  %s10, 16, %s112, [#allocation12]
    $region45: #{tpu_custom_call.1} parent=1 // pred_fallthru
      _
    // Predicated region
    $region46: #{tpu_custom_call.1} parent=1 // pred_check
      _
    $region47: #{tpu_custom_call.1} parent=1 // pred_check_branch
      %116 = sbr.rel (0) target = $region49
    $region48: #{tpu_custom_call.1} parent=1 // pred_region
      %s118 = ssub.s32 128, 128
      %119 = vsyncadd [#allocation15], %s118
      %s120 = sshll.u32 [#allocation14], 4
      %s121 = int_to_ptr.vmem [resolvable:$true] %s120
      %126 = dma.hbm_to_vmem [thread:$0]  %s11, 128, %s121, [#allocation15], 64, 64, 4
    $region49: #{tpu_custom_call.1} parent=1 // pred_fallthru
      _
    // Predicated region
    $region50: #{tpu_custom_call.1} parent=1 // pred_check
      _
    $region51: #{tpu_custom_call.1} parent=1 // pred_check_branch
      %128 = sbr.rel (0) target = $region53
    $region52: #{tpu_custom_call.1} parent=1 // pred_region
      _
    $region53: #{tpu_custom_call.1} parent=1 // pred_fallthru
      _
    // Predicated region
    $region54: #{tpu_custom_call.1} parent=1 // pred_check
      _
    $region55: #{tpu_custom_call.1} parent=1 // pred_check_branch
      %130 = sbr.rel (0) target = $region57
    $region56: #{tpu_custom_call.1} parent=1 // pred_region
      _
    $region57: #{tpu_custom_call.1} parent=1 // pred_fallthru
      _
    // Predicated region
    $region58: #{tpu_custom_call.1} parent=1 // pred_check
      _
    $region59: #{tpu_custom_call.1} parent=1 // pred_check_branch
      %132 = sbr.rel (0) target = $region61
    $region60: #{tpu_custom_call.1} parent=1 // pred_region
      _
    $region61: #{tpu_custom_call.1} parent=1 // pred_fallthru
      _
    // Predicated region
    $region62: #{tpu_custom_call.1} parent=1 // pred_check
      _
    $region63: #{tpu_custom_call.1} parent=1 // pred_check_branch
      %134 = sbr.rel (0) target = $region65
    $region64: #{tpu_custom_call.1} parent=1 // pred_region
      _
    $region65: #{tpu_custom_call.1} parent=1 // pred_fallthru
      _
    // Predicated region
    $region66: #{tpu_custom_call.1} parent=1 // pred_check
      _
    $region67: #{tpu_custom_call.1} parent=1 // pred_check_branch
      %136 = sbr.rel (0) target = $region69
    $region68: #{tpu_custom_call.1} parent=1 // pred_region
      _
    $region69: #{tpu_custom_call.1} parent=1 // pred_fallthru
      _
    // Predicated region
    $region70: #{tpu_custom_call.1} parent=1 // pred_check
      _
    $region71: #{tpu_custom_call.1} parent=1 // pred_check_branch
      %138 = sbr.rel (0) target = $region73
    $region72: #{tpu_custom_call.1} parent=1 // pred_region
      _
    $region73: #{tpu_custom_call.1} parent=1 // pred_fallthru
      _
    // Predicated region
    $region74: #{tpu_custom_call.1} parent=1 // pred_check
      _
    $region75: #{tpu_custom_call.1} parent=1 // pred_check_branch
      %140 = sbr.rel (0) target = $region77
    $region76: #{tpu_custom_call.1} parent=1 // pred_region
      %s142 = ssub.s32 256, 256
      %143 = vsyncadd [#allocation15], %s142
      %s144 = sshll.u32 [#allocation16], 4
      %s145 = int_to_ptr.vmem [resolvable:$true] %s144
      %150 = dma.hbm_to_vmem [thread:$0]  %s18, 256, %s145, [#allocation15], 64, 64, 4
    $region77: #{tpu_custom_call.1} parent=1 // pred_fallthru
      _
    // Predicated region
    $region78: #{tpu_custom_call.1} parent=1 // pred_check
      _
    $region79: #{tpu_custom_call.1} parent=1 // pred_check_branch
      %152 = sbr.rel (0) target = $region81
    $region80: #{tpu_custom_call.1} parent=1 // pred_region
      _
    $region81: #{tpu_custom_call.1} parent=1 // pred_fallthru
      _
    // Predicated region
    $region82: #{tpu_custom_call.1} parent=1 // pred_check
      _
    $region83: #{tpu_custom_call.1} parent=1 // pred_check_branch
      %154 = sbr.rel (0) target = $region85
    $region84: #{tpu_custom_call.1} parent=1 // pred_region
      _
    $region85: #{tpu_custom_call.1} parent=1 // pred_fallthru
      _
    // Predicated region
    $region86: #{tpu_custom_call.1} parent=1 // pred_check
      _
    $region87: #{tpu_custom_call.1} parent=1 // pred_check_branch
      %156 = sbr.rel (0) target = $region89
    $region88: #{tpu_custom_call.1} parent=1 // pred_region
      _
    $region89: #{tpu_custom_call.1} parent=1 // pred_fallthru
      _
    // Predicated region
    $region90: #{tpu_custom_call.1} parent=1 // pred_check
      _
    $region91: #{tpu_custom_call.1} parent=1 // pred_check_branch
      %158 = sbr.rel (0) target = $region93
    $region92: #{tpu_custom_call.1} parent=1 // pred_region
      %159 = dma.done [#allocation3], 16
    $region93: #{tpu_custom_call.1} parent=1 // pred_fallthru
      _
    // Predicated region
    $region94: #{tpu_custom_call.1} parent=1 // pred_check
      _
    $region95: #{tpu_custom_call.1} parent=1 // pred_check_branch
      %161 = sbr.rel (0) target = $region97
    $region96: #{tpu_custom_call.1} parent=1 // pred_region
      %162 = dma.done [#allocation6], 16
    $region97: #{tpu_custom_call.1} parent=1 // pred_fallthru
      _
    // Predicated region
    $region98: #{tpu_custom_call.1} parent=1 // pred_check
      _
    $region99: #{tpu_custom_call.1} parent=1 // pred_check_branch
      %164 = sbr.rel (0) target = $region101
    $region100: #{tpu_custom_call.1} parent=1 // pred_region
      %165 = dma.done [#allocation6], 16
    $region101: #{tpu_custom_call.1} parent=1 // pred_fallthru
      _
    // Predicated region
    $region102: #{tpu_custom_call.1} parent=1 // pred_check
      _
    $region103: #{tpu_custom_call.1} parent=1 // pred_check_branch
      %167 = sbr.rel (0) target = $region105
    $region104: #{tpu_custom_call.1} parent=1 // pred_region
      %168 = dma.done [#allocation9], 256
    $region105: #{tpu_custom_call.1} parent=1 // pred_fallthru
      _
    // Predicated region
    $region106: #{tpu_custom_call.1} parent=1 // pred_check
      _
    $region107: #{tpu_custom_call.1} parent=1 // pred_check_branch
      %170 = sbr.rel (0) target = $region109
    $region108: #{tpu_custom_call.1} parent=1 // pred_region
      %171 = dma.done [#allocation9], 16
    $region109: #{tpu_custom_call.1} parent=1 // pred_fallthru
      _
    // Predicated region
    $region110: #{tpu_custom_call.1} parent=1 // pred_check
      _
    $region111: #{tpu_custom_call.1} parent=1 // pred_check_branch
      %173 = sbr.rel (0) target = $region113
    $region112: #{tpu_custom_call.1} parent=1 // pred_region
      %174 = dma.done [#allocation12], 256
    $region113: #{tpu_custom_call.1} parent=1 // pred_fallthru
      _
    // Predicated region
    $region114: #{tpu_custom_call.1} parent=1 // pred_check
      _
    $region115: #{tpu_custom_call.1} parent=1 // pred_check_branch
      %176 = sbr.rel (0) target = $region117
    $region116: #{tpu_custom_call.1} parent=1 // pred_region
      %177 = dma.done [#allocation12], 16
    $region117: #{tpu_custom_call.1} parent=1 // pred_fallthru
      _
    // Predicated region
    $region118: #{tpu_custom_call.1} parent=1 // pred_check
      _
    $region119: #{tpu_custom_call.1} parent=1 // pred_check_branch
      %179 = sbr.rel (0) target = $region121
    $region120: #{tpu_custom_call.1} parent=1 // pred_region
      %180 = dma.done [#allocation15], 128
    $region121: #{tpu_custom_call.1} parent=1 // pred_fallthru
      _
    // Predicated region
    $region122: #{tpu_custom_call.1} parent=1 // pred_check
      _
    $region123: #{tpu_custom_call.1} parent=1 // pred_check_branch
      %182 = sbr.rel (0) target = $region125
    $region124: #{tpu_custom_call.1} parent=1 // pred_region
      %183 = dma.done [#allocation15], 256
    $region125: #{tpu_custom_call.1} parent=1 // pred_fallthru
      _
    %v185 = vld [vmem:[%s0] sm:$0xff]
    %v186 = vld [vmem:[%s0 + $0x8] sm:$0xff]
    %v187 = vld [vmem:[%s0 + $0x10] sm:$0xff]
    %v188 = vld [vmem:[%s0 + $0x18] sm:$0xff]
    %v189 = vpack.c.bf16 %v186, %v185
    %v190 = vpack.c.bf16 %v188, %v187
    %v191 = vld [vmem:[%s1] sm:$0xf]
    %v192 = vld [vmem:[%s1 + $0x4] sm:$0xf]
    %v193 = vld [vmem:[%s1 + $0x8] sm:$0xf]
    %v194 = vld [vmem:[%s1 + $0xc] sm:$0xf]
    %v195 = vld [vmem:[%s1 + $0x10] sm:$0xf]
    %v196 = vld [vmem:[%s1 + $0x14] sm:$0xf]
    %v197 = vld [vmem:[%s1 + $0x18] sm:$0xf]
    %v198 = vld [vmem:[%s1 + $0x1c] sm:$0xf]
    %v199 = vld [vmem:[%s2] sm:$0x1]
    %v201 = vlaneseq
    %v202 = vshrl.u32 %v201, 7
    %v203 = vsub.s32 0, %v202
    %v204 = vrot.slane %v199, %v203
    %v214 = vunpack.c.l.b16 %v191
    %v215 = vunpack.c.l.b16 %v192
    %v216 = vunpack.c.l.b16 %v193
    %v217 = vunpack.c.l.b16 %v194
    %v218 = vunpack.c.l.b16 %v195
    %v219 = vunpack.c.l.b16 %v196
    %v220 = vunpack.c.l.b16 %v197
    %v221 = vunpack.c.l.b16 %v198
    %v222 = vpack.c.b16 %v215, %v214
    %v223 = vpack.c.b16 %v217, %v216
    %v224 = vpack.c.b16 %v219, %v218
    %v225 = vpack.c.b16 %v221, %v220
    %vm230 = vcmask 523264
    %v232 = vsel %vm230, %v189, 0
    %v235 = vsel %vm230, %v190, 0
    %237 = vmatprep.subr.bf16.mxu0 0
    %238 = vmatpush1.bf16.msra.mxu0 0
    %239 = vmatprep.subr.bf16.mxu0 0
    %240 = vmatpush1.bf16.msra.mxu0 0
    %241 = vmatprep.subr.bf16.mxu0 0
    %242 = vmatpush1.bf16.msra.mxu0 0
    %243 = vmatprep.subr.bf16.mxu0 0
    %244 = vmatpush1.bf16.msra.mxu0 0
    %245 = vmatprep.subr.bf16.mxu0 0
    %246 = vmatpush1.bf16.msra.mxu0 %v225
    %247 = vmatprep.subr.bf16.mxu0 0
    %248 = vmatpush1.bf16.msra.mxu0 %v224
    %249 = vmatprep.subr.bf16.mxu0 0
    %250 = vmatpush1.bf16.msra.mxu0 %v223
    %251 = vmatprep.subr.bf16.mxu0 0
    %252 = vmatpush1.bf16.msra.mxu0 %v222
    %253 = vmatprep.subr.bf16.mxu0 0
    %254 = vmatpush2.bf16.msra.mxu0 0
    %255 = vmatprep.subr.bf16.mxu0 0
    %256 = vmatpush2.bf16.msra.mxu0 0
    %257 = vmatprep.subr.bf16.mxu0 0
    %258 = vmatpush2.bf16.msra.mxu0 0
    %259 = vmatprep.subr.bf16.mxu0 0
    %260 = vmatpush2.bf16.msra.mxu0 0
    %261 = vmatprep.subr.bf16.mxu0 0
    %262 = vmatpush2.bf16.msra.mxu0 0
    %263 = vmatprep.subr.bf16.mxu0 0
    %264 = vmatpush2.bf16.msra.mxu0 0
    %265 = vmatprep.subr.bf16.mxu0 0
    %266 = vmatpush2.bf16.msra.mxu0 0
    %267 = vmatprep.subr.bf16.mxu0 0
    %268 = vmatpush2.bf16.msra.mxu0 0
    %269 = vmatprep.mubr.bf16.mxu0 0
    %270 = vmatmul.mubr.bf16.gmra.mxu0 %v232
    %v271 = vpop.f32.mrf.mxu0
    %v272 = vadd.f32 %v204, %v271
    %v273 = vpop.f32.mrf.mxu0
    %v274 = vpop.f32.mrf.mxu0
    %v275 = vadd.f32 %v204, %v274
    %v276 = vpop.f32.mrf.mxu0
    %277 = vmatprep.mubr.bf16.mxu0 0
    %278 = vmatmul.mubr.bf16.gmra.mxu0 %v235
    %v279 = vpop.f32.mrf.mxu0
    %v280 = vadd.f32 %v204, %v279
    %v281 = vpop.f32.mrf.mxu0
    %v282 = vpop.f32.mrf.mxu0
    %v283 = vadd.f32 %v204, %v282
    %v284 = vpop.f32.mrf.mxu0
    %285 = vdwg.mxu0
    %v286 = vld [vmem:[#allocation2] sm:$0x1]
    %v287 = vld [vmem:[#allocation5] sm:$0x1]
    %vm288 = vcmask 261120
    %v289 = vsel %vm288, %v272, 0.0
    %290 = vadd.xlane.f32.xlu0 %v289
    %v291 = vpop.xlane.xlu0 %290
    %v292 = vsel %vm288, %v275, 0.0
    %293 = vadd.xlane.f32.xlu0 %v292
    %v294 = vpop.xlane.xlu0 %293
    %v295 = vsel %vm288, %v280, 0.0
    %296 = vadd.xlane.f32.xlu0 %v295
    %v297 = vpop.xlane.xlu0 %296
    %v298 = vsel %vm288, %v283, 0.0
    %299 = vadd.xlane.f32.xlu0 %v298
    %v300 = vpop.xlane.xlu0 %299
    %v301 = vrcp.pop 32.0
    %v302 = vmul.f32 %v291, %v301
    %v303 = vmul.f32 %v294, %v301
    %v304 = vmul.f32 %v297, %v301
    %v305 = vmul.f32 %v300, %v301
    %v306 = vsub.f32 %v272, %v302
    %v307 = vsub.f32 %v275, %v303
    %v308 = vsub.f32 %v280, %v304
    %v309 = vsub.f32 %v283, %v305
    %v310 = vmul.f32 %v306, %v306
    %v311 = vmul.f32 %v307, %v307
    %v312 = vmul.f32 %v308, %v308
    %v313 = vmul.f32 %v309, %v309
    %v314 = vsel %vm288, %v310, 0.0
    %315 = vadd.xlane.f32.xlu0 %v314
    %v316 = vpop.xlane.xlu0 %315
    %v317 = vsel %vm288, %v311, 0.0
    %318 = vadd.xlane.f32.xlu0 %v317
    %v319 = vpop.xlane.xlu0 %318
    %v320 = vsel %vm288, %v312, 0.0
    %321 = vadd.xlane.f32.xlu0 %v320
    %v322 = vpop.xlane.xlu0 %321
    %v323 = vsel %vm288, %v313, 0.0
    %324 = vadd.xlane.f32.xlu0 %v323
    %v325 = vpop.xlane.xlu0 %324
    %v326 = vmul.f32 %v316, %v301
    %v327 = vmul.f32 %v319, %v301
    %v328 = vmul.f32 %v322, %v301
    %v329 = vmul.f32 %v325, %v301
    %v330 = vadd.f32 %v326, 1e-05
    %v331 = vadd.f32 %v327, 1e-05
    %v332 = vadd.f32 %v328, 1e-05
    %v333 = vadd.f32 %v329, 1e-05
    %v334 = vrsqrt.pop %v330
    %v335 = vrsqrt.pop %v331
    %v336 = vrsqrt.pop %v332
    %v337 = vrsqrt.pop %v333
    %v338 = vmul.f32 %v306, %v334
    %v339 = vmul.f32 %v307, %v335
    %v340 = vmul.f32 %v308, %v336
    %v341 = vmul.f32 %v309, %v337
    %v343 = vlaneseq
    %v344 = vshrl.u32 %v343, 7
    %v345 = vsub.s32 0, %v344
    %v346 = vrot.slane %v286, %v345
    %v348 = vmul.f32 %v338, %v346
    %v349 = vmul.f32 %v339, %v346
    %v350 = vmul.f32 %v340, %v346
    %v351 = vmul.f32 %v341, %v346
    %v353 = vlaneseq
    %v354 = vshrl.u32 %v353, 7
    %v355 = vsub.s32 0, %v354
    %v356 = vrot.slane %v287, %v355
    %v358 = vadd.f32 %v348, %v356
    %v359 = vadd.f32 %v349, %v356
    %v360 = vadd.f32 %v350, %v356
    %v361 = vadd.f32 %v351, %v356
    %v362 = vmul.f32 %v358, 0.5
    %v363 = vmul.f32 %v359, 0.5
    %v364 = vmul.f32 %v360, 0.5
    %v365 = vmul.f32 %v361, 0.5
    %v366 = vmul.f32 %v358, 0.70710677
    %v367 = vmul.f32 %v359, 0.70710677
    %v368 = vmul.f32 %v360, 0.70710677
    %v369 = vmul.f32 %v361, 0.70710677
    %v370 = verf.f32.pop %v366
    %v371 = verf.f32.pop %v367
    %v372 = verf.f32.pop %v368
    %v373 = verf.f32.pop %v369
    %v374 = vadd.f32 %v370, 1.0
    %v375 = vadd.f32 %v371, 1.0
    %v376 = vadd.f32 %v372, 1.0
    %v377 = vadd.f32 %v373, 1.0
    %v378 = vmul.f32 %v362, %v374
    %v379 = vmul.f32 %v363, %v375
    %v380 = vmul.f32 %v364, %v376
    %v381 = vmul.f32 %v365, %v377
    %v382 = vpack.c.bf16 %v379, %v378
    %v383 = vpack.c.bf16 %v381, %v380
    %v384 = vld [vmem:[#allocation11] sm:$0xf]
    %v385 = vld [vmem:[#allocation11 + $0x4] sm:$0xf]
    %v386 = vld [vmem:[#allocation11 + $0x8] sm:$0xf]
    %v387 = vld [vmem:[#allocation11 + $0xc] sm:$0xf]
    %v388 = vld [vmem:[#allocation13] sm:$0x1]
    %v390 = vlaneseq
    %v391 = vshrl.u32 %v390, 7
    %v392 = vsub.s32 0, %v391
    %v393 = vrot.slane %v388, %v392
    %v399 = vunpack.c.l.b16 %v384
    %v400 = vunpack.c.l.b16 %v385
    %v401 = vunpack.c.l.b16 %v386
    %v402 = vunpack.c.l.b16 %v387
    %v403 = vpack.c.b16 %v400, %v399
    %v404 = vpack.c.b16 %v402, %v401
    %v408 = vsel %vm288, %v382, 0
    %v411 = vsel %vm288, %v383, 0
    %413 = vmatprep.subr.bf16.mxu0 0
    %414 = vmatpush1.bf16.msra.mxu0 0
    %415 = vmatprep.subr.bf16.mxu0 0
    %416 = vmatpush1.bf16.msra.mxu0 0
    %417 = vmatprep.subr.bf16.mxu0 0
    %418 = vmatpush1.bf16.msra.mxu0 0
    %419 = vmatprep.subr.bf16.mxu0 0
    %420 = vmatpush1.bf16.msra.mxu0 0
    %421 = vmatprep.subr.bf16.mxu0 0
    %422 = vmatpush1.bf16.msra.mxu0 0
    %423 = vmatprep.subr.bf16.mxu0 0
    %424 = vmatpush1.bf16.msra.mxu0 0
    %425 = vmatprep.subr.bf16.mxu0 0
    %426 = vmatpush1.bf16.msra.mxu0 %v404
    %427 = vmatprep.subr.bf16.mxu0 0
    %428 = vmatpush1.bf16.msra.mxu0 %v403
    %429 = vmatprep.subr.bf16.mxu0 0
    %430 = vmatpush2.bf16.msra.mxu0 0
    %431 = vmatprep.subr.bf16.mxu0 0
    %432 = vmatpush2.bf16.msra.mxu0 0
    %433 = vmatprep.subr.bf16.mxu0 0
    %434 = vmatpush2.bf16.msra.mxu0 0
    %435 = vmatprep.subr.bf16.mxu0 0
    %436 = vmatpush2.bf16.msra.mxu0 0
    %437 = vmatprep.subr.bf16.mxu0 0
    %438 = vmatpush2.bf16.msra.mxu0 0
    %439 = vmatprep.subr.bf16.mxu0 0
    %440 = vmatpush2.bf16.msra.mxu0 0
    %441 = vmatprep.subr.bf16.mxu0 0
    %442 = vmatpush2.bf16.msra.mxu0 0
    %443 = vmatprep.subr.bf16.mxu0 0
    %444 = vmatpush2.bf16.msra.mxu0 0
    %445 = vmatprep.mubr.bf16.mxu0 0
    %446 = vmatmul.mubr.bf16.gmra.mxu0 %v408
    %v447 = vpop.f32.mrf.mxu0
    %v448 = vadd.f32 %v393, %v447
    %v449 = vpop.f32.mrf.mxu0
    %v450 = vpop.f32.mrf.mxu0
    %v451 = vadd.f32 %v393, %v450
    %v452 = vpop.f32.mrf.mxu0
    %453 = vmatprep.mubr.bf16.mxu0 0
    %454 = vmatmul.mubr.bf16.gmra.mxu0 %v411
    %v455 = vpop.f32.mrf.mxu0
    %v456 = vadd.f32 %v393, %v455
    %v457 = vpop.f32.mrf.mxu0
    %v458 = vpop.f32.mrf.mxu0
    %v459 = vadd.f32 %v393, %v458
    %v460 = vpop.f32.mrf.mxu0
    %461 = vdwg.mxu0
    %v462 = vld [vmem:[%s5] sm:$0xf]
    %v463 = vld [vmem:[%s5 + $0x4] sm:$0xf]
    %v464 = vld [vmem:[%s5 + $0x8] sm:$0xf]
    %v465 = vld [vmem:[%s5 + $0xc] sm:$0xf]
    %v466 = vld [vmem:[#allocation7] sm:$0x1]
    %v468 = vlaneseq
    %v469 = vshrl.u32 %v468, 7
    %v470 = vsub.s32 0, %v469
    %v471 = vrot.slane %v466, %v470
    %v477 = vunpack.c.l.b16 %v462
    %v478 = vunpack.c.l.b16 %v463
    %v479 = vunpack.c.l.b16 %v464
    %v480 = vunpack.c.l.b16 %v465
    %v481 = vpack.c.b16 %v478, %v477
    %v482 = vpack.c.b16 %v480, %v479
    %485 = vmatprep.subr.bf16.mxu0 0
    %486 = vmatpush1.bf16.msra.mxu0 0
    %487 = vmatprep.subr.bf16.mxu0 0
    %488 = vmatpush1.bf16.msra.mxu0 0
    %489 = vmatprep.subr.bf16.mxu0 0
    %490 = vmatpush1.bf16.msra.mxu0 0
    %491 = vmatprep.subr.bf16.mxu0 0
    %492 = vmatpush1.bf16.msra.mxu0 0
    %493 = vmatprep.subr.bf16.mxu0 0
    %494 = vmatpush1.bf16.msra.mxu0 0
    %495 = vmatprep.subr.bf16.mxu0 0
    %496 = vmatpush1.bf16.msra.mxu0 0
    %497 = vmatprep.subr.bf16.mxu0 0
    %498 = vmatpush1.bf16.msra.mxu0 %v482
    %499 = vmatprep.subr.bf16.mxu0 0
    %500 = vmatpush1.bf16.msra.mxu0 %v481
    %501 = vmatprep.subr.bf16.mxu0 0
    %502 = vmatpush2.bf16.msra.mxu0 0
    %503 = vmatprep.subr.bf16.mxu0 0
    %504 = vmatpush2.bf16.msra.mxu0 0
    %505 = vmatprep.subr.bf16.mxu0 0
    %506 = vmatpush2.bf16.msra.mxu0 0
    %507 = vmatprep.subr.bf16.mxu0 0
    %508 = vmatpush2.bf16.msra.mxu0 0
    %509 = vmatprep.subr.bf16.mxu0 0
    %510 = vmatpush2.bf16.msra.mxu0 0
    %511 = vmatprep.subr.bf16.mxu0 0
    %512 = vmatpush2.bf16.msra.mxu0 0
    %513 = vmatprep.subr.bf16.mxu0 0
    %514 = vmatpush2.bf16.msra.mxu0 0
    %515 = vmatprep.subr.bf16.mxu0 0
    %516 = vmatpush2.bf16.msra.mxu0 0
    %517 = vmatprep.mubr.bf16.mxu0 0
    %518 = vmatmul.mubr.bf16.gmra.mxu0 %v408
    %v519 = vpop.f32.mrf.mxu0
    %v520 = vadd.f32 %v471, %v519
    %v521 = vpop.f32.mrf.mxu0
    %v522 = vpop.f32.mrf.mxu0
    %v523 = vadd.f32 %v471, %v522
    %v524 = vpop.f32.mrf.mxu0
    %525 = vmatprep.mubr.bf16.mxu0 0
    %526 = vmatmul.mubr.bf16.gmra.mxu0 %v411
    %v527 = vpop.f32.mrf.mxu0
    %v528 = vadd.f32 %v471, %v527
    %v529 = vpop.f32.mrf.mxu0
    %v530 = vpop.f32.mrf.mxu0
    %v531 = vadd.f32 %v471, %v530
    %v532 = vpop.f32.mrf.mxu0
    %533 = vdwg.mxu0
    %v534 = vld [vmem:[#allocation8] sm:$0xf]
    %v535 = vld [vmem:[#allocation8 + $0x4] sm:$0xf]
    %v536 = vld [vmem:[#allocation8 + $0x8] sm:$0xf]
    %v537 = vld [vmem:[#allocation8 + $0xc] sm:$0xf]
    %v538 = vld [vmem:[#allocation10] sm:$0x1]
    %v540 = vlaneseq
    %v541 = vshrl.u32 %v540, 7
    %v542 = vsub.s32 0, %v541
    %v543 = vrot.slane %v538, %v542
    %v549 = vunpack.c.l.b16 %v534
    %v550 = vunpack.c.l.b16 %v535
    %v551 = vunpack.c.l.b16 %v536
    %v552 = vunpack.c.l.b16 %v537
    %v553 = vpack.c.b16 %v550, %v549
    %v554 = vpack.c.b16 %v552, %v551
    %557 = vmatprep.subr.bf16.mxu0 0
    %558 = vmatpush1.bf16.msra.mxu0 0
    %559 = vmatprep.subr.bf16.mxu0 0
    %560 = vmatpush1.bf16.msra.mxu0 0
    %561 = vmatprep.subr.bf16.mxu0 0
    %562 = vmatpush1.bf16.msra.mxu0 0
    %563 = vmatprep.subr.bf16.mxu0 0
    %564 = vmatpush1.bf16.msra.mxu0 0
    %565 = vmatprep.subr.bf16.mxu0 0
    %566 = vmatpush1.bf16.msra.mxu0 0
    %567 = vmatprep.subr.bf16.mxu0 0
    %568 = vmatpush1.bf16.msra.mxu0 0
    %569 = vmatprep.subr.bf16.mxu0 0
    %570 = vmatpush1.bf16.msra.mxu0 %v554
    %571 = vmatprep.subr.bf16.mxu0 0
    %572 = vmatpush1.bf16.msra.mxu0 %v553
    %573 = vmatprep.subr.bf16.mxu0 0
    %574 = vmatpush2.bf16.msra.mxu0 0
    %575 = vmatprep.subr.bf16.mxu0 0
    %576 = vmatpush2.bf16.msra.mxu0 0
    %577 = vmatprep.subr.bf16.mxu0 0
    %578 = vmatpush2.bf16.msra.mxu0 0
    %579 = vmatprep.subr.bf16.mxu0 0
    %580 = vmatpush2.bf16.msra.mxu0 0
    %581 = vmatprep.subr.bf16.mxu0 0
    %582 = vmatpush2.bf16.msra.mxu0 0
    %583 = vmatprep.subr.bf16.mxu0 0
    %584 = vmatpush2.bf16.msra.mxu0 0
    %585 = vmatprep.subr.bf16.mxu0 0
    %586 = vmatpush2.bf16.msra.mxu0 0
    %587 = vmatprep.subr.bf16.mxu0 0
    %588 = vmatpush2.bf16.msra.mxu0 0
    %589 = vmatprep.mubr.bf16.mxu0 0
    %590 = vmatmul.mubr.bf16.gmra.mxu0 %v408
    %v591 = vpop.f32.mrf.mxu0
    %v592 = vadd.f32 %v543, %v591
    %v593 = vpop.f32.mrf.mxu0
    %v594 = vpop.f32.mrf.mxu0
    %v595 = vadd.f32 %v543, %v594
    %v596 = vpop.f32.mrf.mxu0
    %597 = vmatprep.mubr.bf16.mxu0 0
    %598 = vmatmul.mubr.bf16.gmra.mxu0 %v411
    %v599 = vpop.f32.mrf.mxu0
    %v600 = vadd.f32 %v543, %v599
    %v601 = vpop.f32.mrf.mxu0
    %v602 = vpop.f32.mrf.mxu0
    %v603 = vadd.f32 %v543, %v602
    %v604 = vpop.f32.mrf.mxu0
    %605 = vdwg.mxu0
    %v606 = vld [vmem:[%s13] sm:$0xff]
    %v607 = vld [vmem:[%s13 + $0x8] sm:$0xff]
    %v608 = vld [vmem:[%s13 + $0x10] sm:$0xff]
    %v609 = vld [vmem:[%s13 + $0x18] sm:$0xff]
    %v610 = vsel %vm288, %v520, -inf
    %611 = vmax.xlane.f32.xlu0 %v610
    %v612 = vpop.xlane.xlu0 %611
    %v613 = vsel %vm288, %v523, -inf
    %614 = vmax.xlane.f32.xlu0 %v613
    %v615 = vpop.xlane.xlu0 %614
    %v616 = vsel %vm288, %v528, -inf
    %617 = vmax.xlane.f32.xlu0 %v616
    %v618 = vpop.xlane.xlu0 %617
    %v619 = vsel %vm288, %v531, -inf
    %620 = vmax.xlane.f32.xlu0 %v619
    %v621 = vpop.xlane.xlu0 %620
    %v622 = vsub.f32 %v520, %v612
    %v623 = vsub.f32 %v523, %v615
    %v624 = vsub.f32 %v528, %v618
    %v625 = vsub.f32 %v531, %v621
    %v626 = vmul.f32 %v622, 1.442695
    %v627 = vpow.pop %v626
    %v628 = vmul.f32 %v623, 1.442695
    %v629 = vpow.pop %v628
    %v630 = vmul.f32 %v624, 1.442695
    %v631 = vpow.pop %v630
    %v632 = vmul.f32 %v625, 1.442695
    %v633 = vpow.pop %v632
    %v635 = vsel %vm288, %v627, 0
    %v638 = vsel %vm288, %v629, 0
    %v641 = vsel %vm288, %v631, 0
    %v644 = vsel %vm288, %v633, 0
    %646 = vmatprep.subr.mxu0 0.0
    %647 = vmatpush1.msra.mxu0 0.0
    %648 = vmatprep.subr.mxu0 0.0
    %649 = vmatpush1.msra.mxu0 0.0
    %650 = vmatprep.subr.mxu0 0.0
    %651 = vmatpush1.msra.mxu0 0.0
    %652 = vmatprep.subr.mxu0 0.0
    %653 = vmatpush1.msra.mxu0 0.0
    %654 = vmatprep.subr.mxu0 0.0
    %655 = vmatpush1.msra.mxu0 0.0
    %656 = vmatprep.subr.mxu0 0.0
    %657 = vmatpush1.msra.mxu0 0.0
    %658 = vmatprep.subr.mxu0 0.0
    %659 = vmatpush1.msra.mxu0 0.0
    %660 = vmatprep.subr.mxu0 0.0
    %661 = vmatpush1.msra.mxu0 0.0
    %662 = vmatprep.subr.mxu0 0.0
    %663 = vmatpush1.msra.mxu0 0.0
    %664 = vmatprep.subr.mxu0 0.0
    %665 = vmatpush1.msra.mxu0 0.0
    %666 = vmatprep.subr.mxu0 0.0
    %667 = vmatpush1.msra.mxu0 0.0
    %668 = vmatprep.subr.mxu0 0.0
    %669 = vmatpush1.msra.mxu0 0.0
    %670 = vmatprep.subr.mxu0 0.0
    %671 = vmatpush1.msra.mxu0 %v609
    %672 = vmatprep.subr.mxu0 0.0
    %673 = vmatpush1.msra.mxu0 %v608
    %674 = vmatprep.subr.mxu0 0.0
    %675 = vmatpush1.msra.mxu0 %v607
    %676 = vmatprep.subr.mxu0 0.0
    %677 = vmatpush1.msra.mxu0 %v606
    %678 = vmatprep.subr.mxu0 0.0
    %679 = vmatpush2.msra.mxu0 0.0
    %680 = vmatprep.subr.mxu0 0.0
    %681 = vmatpush2.msra.mxu0 0.0
    %682 = vmatprep.subr.mxu0 0.0
    %683 = vmatpush2.msra.mxu0 0.0
    %684 = vmatprep.subr.mxu0 0.0
    %685 = vmatpush2.msra.mxu0 0.0
    %686 = vmatprep.subr.mxu0 0.0
    %687 = vmatpush2.msra.mxu0 0.0
    %688 = vmatprep.subr.mxu0 0.0
    %689 = vmatpush2.msra.mxu0 0.0
    %690 = vmatprep.subr.mxu0 0.0
    %691 = vmatpush2.msra.mxu0 0.0
    %692 = vmatprep.subr.mxu0 0.0
    %693 = vmatpush2.msra.mxu0 0.0
    %694 = vmatprep.subr.mxu0 0.0
    %695 = vmatpush2.msra.mxu0 0.0
    %696 = vmatprep.subr.mxu0 0.0
    %697 = vmatpush2.msra.mxu0 0.0
    %698 = vmatprep.subr.mxu0 0.0
    %699 = vmatpush2.msra.mxu0 0.0
    %700 = vmatprep.subr.mxu0 0.0
    %701 = vmatpush2.msra.mxu0 0.0
    %702 = vmatprep.subr.mxu0 0.0
    %703 = vmatpush2.msra.mxu0 0.0
    %704 = vmatprep.subr.mxu0 0.0
    %705 = vmatpush2.msra.mxu0 0.0
    %706 = vmatprep.subr.mxu0 0.0
    %707 = vmatpush2.msra.mxu0 0.0
    %708 = vmatprep.subr.mxu0 0.0
    %709 = vmatpush2.msra.mxu0 0.0
    %710 = vmatprep.mubr.f32.mxu0 0.0
    %711 = vmatmul.mubr.f32.gmra.mxu0 %v635
    %v712 = vpop.f32.mrf.mxu0
    %v713 = vadd.f32 0.0, %v712
    %v714 = vpop.f32.mrf.mxu0
    %715 = vmatprep.mubr.f32.mxu0 0.0
    %716 = vmatmul.mubr.f32.gmra.mxu0 %v638
    %v717 = vpop.f32.mrf.mxu0
    %v718 = vadd.f32 0.0, %v717
    %v719 = vpop.f32.mrf.mxu0
    %720 = vmatprep.mubr.f32.mxu0 0.0
    %721 = vmatmul.mubr.f32.gmra.mxu0 %v641
    %v722 = vpop.f32.mrf.mxu0
    %v723 = vadd.f32 0.0, %v722
    %v724 = vpop.f32.mrf.mxu0
    %725 = vmatprep.mubr.f32.mxu0 0.0
    %726 = vmatmul.mubr.f32.gmra.mxu0 %v644
    %v727 = vpop.f32.mrf.mxu0
    %v728 = vadd.f32 0.0, %v727
    %v729 = vpop.f32.mrf.mxu0
    %730 = vdwg.mxu0
    %v731 = vrcp.pop %v713
    %v732 = vmul.f32 %v627, %v731
    %v733 = vrcp.pop %v718
    %v734 = vmul.f32 %v629, %v733
    %v735 = vrcp.pop %v723
    %v736 = vmul.f32 %v631, %v735
    %v737 = vrcp.pop %v728
    %v738 = vmul.f32 %v633, %v737
    %v739 = vsel %vm288, %v592, -inf
    %v740 = vsel %vm288, %v595, -inf
    %v741 = vmax.f32 %v739, %v740
    %v742 = vrot.slane %v741, 4
    %v743 = vmax.f32 %v741, %v742
    %v744 = vrot.slane %v743, 2
    %v745 = vmax.f32 %v743, %v744
    %v746 = vrot.slane %v745, 1
    %v747 = vmax.f32 %v745, %v746
    %v748 = vsel %vm288, %v600, -inf
    %v749 = vsel %vm288, %v603, -inf
    %v750 = vmax.f32 %v748, %v749
    %v751 = vrot.slane %v750, 4
    %v752 = vmax.f32 %v750, %v751
    %v753 = vrot.slane %v752, 2
    %v754 = vmax.f32 %v752, %v753
    %v755 = vrot.slane %v754, 1
    %v756 = vmax.f32 %v754, %v755
    %v757 = vsub.f32 %v592, %v747
    %v758 = vsub.f32 %v595, %v747
    %v759 = vsub.f32 %v600, %v756
    %v760 = vsub.f32 %v603, %v756
    %v761 = vmul.f32 %v757, 1.442695
    %v762 = vpow.pop %v761
    %v763 = vmul.f32 %v758, 1.442695
    %v764 = vpow.pop %v763
    %v765 = vmul.f32 %v759, 1.442695
    %v766 = vpow.pop %v765
    %v767 = vmul.f32 %v760, 1.442695
    %v768 = vpow.pop %v767
    %v769 = vsel %vm288, %v762, 0.0
    %v770 = vsel %vm288, %v764, 0.0
    %v771 = vadd.f32 %v769, %v770
    %v772 = vrot.slane %v771, 4
    %v773 = vadd.f32 %v771, %v772
    %v774 = vrot.slane %v773, 2
    %v775 = vadd.f32 %v773, %v774
    %v776 = vrot.slane %v775, 1
    %v777 = vadd.f32 %v775, %v776
    %v778 = vsel %vm288, %v766, 0.0
    %v779 = vsel %vm288, %v768, 0.0
    %v780 = vadd.f32 %v778, %v779
    %v781 = vrot.slane %v780, 4
    %v782 = vadd.f32 %v780, %v781
    %v783 = vrot.slane %v782, 2
    %v784 = vadd.f32 %v782, %v783
    %v785 = vrot.slane %v784, 1
    %v786 = vadd.f32 %v784, %v785
    %v787 = vrcp.pop %v777
    %v788 = vmul.f32 %v762, %v787
    %v789 = vmul.f32 %v764, %v787
    %v790 = vrcp.pop %v786
    %v791 = vmul.f32 %v766, %v790
    %v792 = vmul.f32 %v768, %v790
    %v793 = vpack.c.bf16 %v789, %v788
    %v794 = vpack.c.bf16 %v792, %v791
    %v795 = vpack.c.bf16 %v451, %v448
    %v796 = vpack.c.bf16 %v459, %v456
    %797 = vxpose.xlu0.c.b16.start [1/8] %v793, 128
    %798 = vxpose.xlu0.c.b16.cont [2/8] 0, 128
    %799 = vxpose.xlu0.c.b16.cont [3/8] 0, 128
    %800 = vxpose.xlu0.c.b16.cont [4/8] 0, 128
    %801 = vxpose.xlu0.c.b16.cont [5/8] 0, 128
    %802 = vxpose.xlu0.c.b16.cont [6/8] 0, 128
    %803 = vxpose.xlu0.c.b16.cont [7/8] 0, 128
    %804 = vxpose.xlu0.c.b16.end [8/8] 0, 128
    %v805 = vpop.trf.xlu0
    %v806 = vpop.trf.xlu0
    %v807 = vpop.trf.xlu0
    %v808 = vpop.trf.xlu0
    %v809 = vpop.trf.xlu0
    %v810 = vpop.trf.xlu0
    %v811 = vpop.trf.xlu0
    %v812 = vpop.trf.xlu0
    %vm813 = vcmask 130048
    %v815 = vsel %vm813, %v805, 0
    %v818 = vsel %vm813, %v806, 0
    %820 = vmatprep.subr.bf16.mxu0 0
    %821 = vmatpush1.bf16.msra.mxu0 0
    %822 = vmatprep.subr.bf16.mxu0 0
    %823 = vmatpush1.bf16.msra.mxu0 0
    %824 = vmatprep.subr.bf16.mxu0 0
    %825 = vmatpush1.bf16.msra.mxu0 0
    %826 = vmatprep.subr.bf16.mxu0 0
    %827 = vmatpush1.bf16.msra.mxu0 0
    %828 = vmatprep.subr.bf16.mxu0 0
    %829 = vmatpush1.bf16.msra.mxu0 0
    %830 = vmatprep.subr.bf16.mxu0 0
    %831 = vmatpush1.bf16.msra.mxu0 0
    %832 = vmatprep.subr.bf16.mxu0 0
    %833 = vmatpush1.bf16.msra.mxu0 0
    %834 = vmatprep.subr.bf16.mxu0 0
    %835 = vmatpush1.bf16.msra.mxu0 %v795
    %836 = vmatprep.subr.bf16.mxu0 0
    %837 = vmatpush2.bf16.msra.mxu0 0
    %838 = vmatprep.subr.bf16.mxu0 0
    %839 = vmatpush2.bf16.msra.mxu0 0
    %840 = vmatprep.subr.bf16.mxu0 0
    %841 = vmatpush2.bf16.msra.mxu0 0
    %842 = vmatprep.subr.bf16.mxu0 0
    %843 = vmatpush2.bf16.msra.mxu0 0
    %844 = vmatprep.subr.bf16.mxu0 0
    %845 = vmatpush2.bf16.msra.mxu0 0
    %846 = vmatprep.subr.bf16.mxu0 0
    %847 = vmatpush2.bf16.msra.mxu0 0
    %848 = vmatprep.subr.bf16.mxu0 0
    %849 = vmatpush2.bf16.msra.mxu0 0
    %850 = vmatprep.subr.bf16.mxu0 0
    %851 = vmatpush2.bf16.msra.mxu0 0
    %852 = vmatprep.mubr.bf16.mxu0 0
    %853 = vmatmul.mubr.bf16.gmra.mxu0 %v815
    %v854 = vpop.f32.mrf.mxu0
    %v855 = vadd.f32 0.0, %v854
    %v856 = vpop.f32.mrf.mxu0
    %v857 = vpop.f32.mrf.mxu0
    %v858 = vadd.f32 0.0, %v857
    %v859 = vpop.f32.mrf.mxu0
    %860 = vmatprep.mubr.bf16.mxu0 0
    %861 = vmatmul.mubr.bf16.gmra.mxu0 %v818
    %v862 = vpop.f32.mrf.mxu0
    %v863 = vadd.f32 0.0, %v862
    %v864 = vpop.f32.mrf.mxu0
    %v865 = vpop.f32.mrf.mxu0
    %v866 = vadd.f32 0.0, %v865
    %v867 = vpop.f32.mrf.mxu0
    %868 = vdwg.mxu0
    %869 = vxpose.xlu0.c.b16.start [1/8] %v794, 128
    %870 = vxpose.xlu0.c.b16.cont [2/8] 0, 128
    %871 = vxpose.xlu0.c.b16.cont [3/8] 0, 128
    %872 = vxpose.xlu0.c.b16.cont [4/8] 0, 128
    %873 = vxpose.xlu0.c.b16.cont [5/8] 0, 128
    %874 = vxpose.xlu0.c.b16.cont [6/8] 0, 128
    %875 = vxpose.xlu0.c.b16.cont [7/8] 0, 128
    %876 = vxpose.xlu0.c.b16.end [8/8] 0, 128
    %v877 = vpop.trf.xlu0
    %v878 = vpop.trf.xlu0
    %v879 = vpop.trf.xlu0
    %v880 = vpop.trf.xlu0
    %v881 = vpop.trf.xlu0
    %v882 = vpop.trf.xlu0
    %v883 = vpop.trf.xlu0
    %v884 = vpop.trf.xlu0
    %v886 = vsel %vm813, %v877, 0
    %v889 = vsel %vm813, %v878, 0
    %891 = vmatprep.subr.bf16.mxu0 0
    %892 = vmatpush1.bf16.msra.mxu0 0
    %893 = vmatprep.subr.bf16.mxu0 0
    %894 = vmatpush1.bf16.msra.mxu0 0
    %895 = vmatprep.subr.bf16.mxu0 0
    %896 = vmatpush1.bf16.msra.mxu0 0
    %897 = vmatprep.subr.bf16.mxu0 0
    %898 = vmatpush1.bf16.msra.mxu0 0
    %899 = vmatprep.subr.bf16.mxu0 0
    %900 = vmatpush1.bf16.msra.mxu0 0
    %901 = vmatprep.subr.bf16.mxu0 0
    %902 = vmatpush1.bf16.msra.mxu0 0
    %903 = vmatprep.subr.bf16.mxu0 0
    %904 = vmatpush1.bf16.msra.mxu0 0
    %905 = vmatprep.subr.bf16.mxu0 0
    %906 = vmatpush1.bf16.msra.mxu0 %v796
    %907 = vmatprep.subr.bf16.mxu0 0
    %908 = vmatpush2.bf16.msra.mxu0 0
    %909 = vmatprep.subr.bf16.mxu0 0
    %910 = vmatpush2.bf16.msra.mxu0 0
    %911 = vmatprep.subr.bf16.mxu0 0
    %912 = vmatpush2.bf16.msra.mxu0 0
    %913 = vmatprep.subr.bf16.mxu0 0
    %914 = vmatpush2.bf16.msra.mxu0 0
    %915 = vmatprep.subr.bf16.mxu0 0
    %916 = vmatpush2.bf16.msra.mxu0 0
    %917 = vmatprep.subr.bf16.mxu0 0
    %918 = vmatpush2.bf16.msra.mxu0 0
    %919 = vmatprep.subr.bf16.mxu0 0
    %920 = vmatpush2.bf16.msra.mxu0 0
    %921 = vmatprep.subr.bf16.mxu0 0
    %922 = vmatpush2.bf16.msra.mxu0 0
    %923 = vmatprep.mubr.bf16.mxu0 0
    %924 = vmatmul.mubr.bf16.gmra.mxu0 %v886
    %v925 = vpop.f32.mrf.mxu0
    %v926 = vadd.f32 0.0, %v925
    %v927 = vpop.f32.mrf.mxu0
    %v928 = vpop.f32.mrf.mxu0
    %v929 = vadd.f32 0.0, %v928
    %v930 = vpop.f32.mrf.mxu0
    %931 = vmatprep.mubr.bf16.mxu0 0
    %932 = vmatmul.mubr.bf16.gmra.mxu0 %v889
    %v933 = vpop.f32.mrf.mxu0
    %v934 = vadd.f32 0.0, %v933
    %v935 = vpop.f32.mrf.mxu0
    %v936 = vpop.f32.mrf.mxu0
    %v937 = vadd.f32 0.0, %v936
    %v938 = vpop.f32.mrf.mxu0
    %939 = vdwg.mxu0
    %v940 = vmul.f32 %v855, %v606
    %v941 = vmul.f32 %v858, %v607
    %v942 = vmul.f32 %v863, %v608
    %v943 = vmul.f32 %v866, %v609
    %v944 = vmul.f32 %v926, %v606
    %v945 = vmul.f32 %v929, %v607
    %v946 = vmul.f32 %v934, %v608
    %v947 = vmul.f32 %v937, %v609
    %v948 = vpack.c.bf16 %v734, %v732
    %v949 = vpack.c.bf16 %v738, %v736
    %v950 = vpack.c.bf16 %v941, %v940
    %v951 = vpack.c.bf16 %v943, %v942
    %v952 = vpack.c.bf16 %v945, %v944
    %v953 = vpack.c.bf16 %v947, %v946
    %v954 = vld [vmem:[%s12] sm:$0xf]
    %v955 = vld [vmem:[%s12 + $0x4] sm:$0xf]
    %v956 = vld [vmem:[%s12 + $0x8] sm:$0xf]
    %v957 = vld [vmem:[%s12 + $0xc] sm:$0xf]
    %v962 = vunpack.c.l.b16 %v954
    %v963 = vunpack.c.l.b16 %v955
    %v964 = vunpack.c.l.b16 %v956
    %v965 = vunpack.c.l.b16 %v957
    %v966 = vpack.c.b16 %v963, %v962
    %v967 = vpack.c.b16 %v965, %v964
    %v969 = vsel %vm813, %v966, 0
    %v972 = vsel %vm813, %v967, 0
    %974 = vmatprep.subr.bf16.mxu0 0
    %975 = vmatpush1.bf16.msra.mxu0 0
    %976 = vmatprep.subr.bf16.mxu0 0
    %977 = vmatpush1.bf16.msra.mxu0 0
    %978 = vmatprep.subr.bf16.mxu0 0
    %979 = vmatpush1.bf16.msra.mxu0 0
    %980 = vmatprep.subr.bf16.mxu0 0
    %981 = vmatpush1.bf16.msra.mxu0 0
    %982 = vmatprep.subr.bf16.mxu0 0
    %983 = vmatpush1.bf16.msra.mxu0 0
    %984 = vmatprep.subr.bf16.mxu0 0
    %985 = vmatpush1.bf16.msra.mxu0 0
    %986 = vmatprep.subr.bf16.mxu0 0
    %987 = vmatpush1.bf16.msra.mxu0 0
    %988 = vmatprep.subr.bf16.mxu0 0
    %989 = vmatpush1.bf16.msra.mxu0 %v795
    %990 = vmatprep.subr.bf16.mxu0 0
    %991 = vmatpush2.bf16.msra.mxu0 0
    %992 = vmatprep.subr.bf16.mxu0 0
    %993 = vmatpush2.bf16.msra.mxu0 0
    %994 = vmatprep.subr.bf16.mxu0 0
    %995 = vmatpush2.bf16.msra.mxu0 0
    %996 = vmatprep.subr.bf16.mxu0 0
    %997 = vmatpush2.bf16.msra.mxu0 0
    %998 = vmatprep.subr.bf16.mxu0 0
    %999 = vmatpush2.bf16.msra.mxu0 0
    %1000 = vmatprep.subr.bf16.mxu0 0
    %1001 = vmatpush2.bf16.msra.mxu0 0
    %1002 = vmatprep.subr.bf16.mxu0 0
    %1003 = vmatpush2.bf16.msra.mxu0 0
    %1004 = vmatprep.subr.bf16.mxu0 0
    %1005 = vmatpush2.bf16.msra.mxu0 0
    %1006 = vmatprep.mubr.bf16.mxu0 0
    %1007 = vmatmul.mubr.bf16.gmra.mxu0 %v969
    %v1008 = vpop.f32.mrf.mxu0
    %v1009 = vadd.f32 0.0, %v1008
    %v1010 = vpop.f32.mrf.mxu0
    %v1011 = vpop.f32.mrf.mxu0
    %v1012 = vadd.f32 0.0, %v1011
    %v1013 = vpop.f32.mrf.mxu0
    %1014 = vmatprep.mubr.bf16.mxu0 0
    %1015 = vmatmul.mubr.bf16.gmra.mxu0 %v972
    %v1016 = vpop.f32.mrf.mxu0
    %v1017 = vadd.f32 0.0, %v1016
    %v1018 = vpop.f32.mrf.mxu0
    %v1019 = vpop.f32.mrf.mxu0
    %v1020 = vadd.f32 0.0, %v1019
    %v1021 = vpop.f32.mrf.mxu0
    %1022 = vdwg.mxu0
    %1023 = vmatprep.subr.bf16.mxu0 0
    %1024 = vmatpush1.bf16.msra.mxu0 0
    %1025 = vmatprep.subr.bf16.mxu0 0
    %1026 = vmatpush1.bf16.msra.mxu0 0
    %1027 = vmatprep.subr.bf16.mxu0 0
    %1028 = vmatpush1.bf16.msra.mxu0 0
    %1029 = vmatprep.subr.bf16.mxu0 0
    %1030 = vmatpush1.bf16.msra.mxu0 0
    %1031 = vmatprep.subr.bf16.mxu0 0
    %1032 = vmatpush1.bf16.msra.mxu0 0
    %1033 = vmatprep.subr.bf16.mxu0 0
    %1034 = vmatpush1.bf16.msra.mxu0 0
    %1035 = vmatprep.subr.bf16.mxu0 0
    %1036 = vmatpush1.bf16.msra.mxu0 0
    %1037 = vmatprep.subr.bf16.mxu0 0
    %1038 = vmatpush1.bf16.msra.mxu0 %v796
    %1039 = vmatprep.subr.bf16.mxu0 0
    %1040 = vmatpush2.bf16.msra.mxu0 0
    %1041 = vmatprep.subr.bf16.mxu0 0
    %1042 = vmatpush2.bf16.msra.mxu0 0
    %1043 = vmatprep.subr.bf16.mxu0 0
    %1044 = vmatpush2.bf16.msra.mxu0 0
    %1045 = vmatprep.subr.bf16.mxu0 0
    %1046 = vmatpush2.bf16.msra.mxu0 0
    %1047 = vmatprep.subr.bf16.mxu0 0
    %1048 = vmatpush2.bf16.msra.mxu0 0
    %1049 = vmatprep.subr.bf16.mxu0 0
    %1050 = vmatpush2.bf16.msra.mxu0 0
    %1051 = vmatprep.subr.bf16.mxu0 0
    %1052 = vmatpush2.bf16.msra.mxu0 0
    %1053 = vmatprep.subr.bf16.mxu0 0
    %1054 = vmatpush2.bf16.msra.mxu0 0
    %1055 = vmatprep.mubr.bf16.mxu0 0
    %1056 = vmatmul.mubr.bf16.gmra.mxu0 %v969
    %v1057 = vpop.f32.mrf.mxu0
    %v1058 = vadd.f32 0.0, %v1057
    %v1059 = vpop.f32.mrf.mxu0
    %v1060 = vpop.f32.mrf.mxu0
    %v1061 = vadd.f32 0.0, %v1060
    %v1062 = vpop.f32.mrf.mxu0
    %1063 = vmatprep.mubr.bf16.mxu0 0
    %1064 = vmatmul.mubr.bf16.gmra.mxu0 %v972
    %v1065 = vpop.f32.mrf.mxu0
    %v1066 = vadd.f32 0.0, %v1065
    %v1067 = vpop.f32.mrf.mxu0
    %v1068 = vpop.f32.mrf.mxu0
    %v1069 = vadd.f32 0.0, %v1068
    %v1070 = vpop.f32.mrf.mxu0
    %1071 = vdwg.mxu0
    %v1072 = vmul.f32 %v1009, %v606
    %v1073 = vmul.f32 %v1012, %v607
    %v1074 = vmul.f32 %v1017, %v608
    %v1075 = vmul.f32 %v1020, %v609
    %v1076 = vmul.f32 %v1058, %v606
    %v1077 = vmul.f32 %v1061, %v607
    %v1078 = vmul.f32 %v1066, %v608
    %v1079 = vmul.f32 %v1069, %v609
    %v1080 = vld [vmem:[#allocation14] sm:$0xf]
    %v1081 = vld [vmem:[#allocation14 + $0x4] sm:$0xf]
    %v1082 = vpack.c.bf16 %v1073, %v1072
    %v1083 = vpack.c.bf16 %v1075, %v1074
    %v1084 = vpack.c.bf16 %v1077, %v1076
    %v1085 = vpack.c.bf16 %v1079, %v1078
    %v1088 = vunpack.c.l.b16 %v1080
    %v1089 = vunpack.c.l.b16 %v1081
    %v1090 = vpack.c.b16 %v1089, %v1088
    %v1092 = vsel %vm288, %v1090, 0
    %1094 = vmatprep.subr.bf16.mxu0 0
    %1095 = vmatpush1.bf16.msra.mxu0 0
    %1096 = vmatprep.subr.bf16.mxu0 0
    %1097 = vmatpush1.bf16.msra.mxu0 0
    %1098 = vmatprep.subr.bf16.mxu0 0
    %1099 = vmatpush1.bf16.msra.mxu0 0
    %1100 = vmatprep.subr.bf16.mxu0 0
    %1101 = vmatpush1.bf16.msra.mxu0 0
    %1102 = vmatprep.subr.bf16.mxu0 0
    %1103 = vmatpush1.bf16.msra.mxu0 0
    %1104 = vmatprep.subr.bf16.mxu0 0
    %1105 = vmatpush1.bf16.msra.mxu0 0
    %1106 = vmatprep.subr.bf16.mxu0 0
    %1107 = vmatpush1.bf16.msra.mxu0 %v1083
    %1108 = vmatprep.subr.bf16.mxu0 0
    %1109 = vmatpush1.bf16.msra.mxu0 %v1082
    %1110 = vmatprep.subr.bf16.mxu0 0
    %1111 = vmatpush2.bf16.msra.mxu0 0
    %1112 = vmatprep.subr.bf16.mxu0 0
    %1113 = vmatpush2.bf16.msra.mxu0 0
    %1114 = vmatprep.subr.bf16.mxu0 0
    %1115 = vmatpush2.bf16.msra.mxu0 0
    %1116 = vmatprep.subr.bf16.mxu0 0
    %1117 = vmatpush2.bf16.msra.mxu0 0
    %1118 = vmatprep.subr.bf16.mxu0 0
    %1119 = vmatpush2.bf16.msra.mxu0 0
    %1120 = vmatprep.subr.bf16.mxu0 0
    %1121 = vmatpush2.bf16.msra.mxu0 0
    %1122 = vmatprep.subr.bf16.mxu0 0
    %1123 = vmatpush2.bf16.msra.mxu0 0
    %1124 = vmatprep.subr.bf16.mxu0 0
    %1125 = vmatpush2.bf16.msra.mxu0 0
    %1126 = vmatprep.mubr.bf16.mxu0 0
    %1127 = vmatmul.mubr.bf16.gmra.mxu0 %v1092
    %v1128 = vpop.f32.mrf.mxu0
    %v1129 = vadd.f32 0.0, %v1128
    %v1130 = vpop.f32.mrf.mxu0
    %v1131 = vpop.f32.mrf.mxu0
    %v1132 = vadd.f32 0.0, %v1131
    %v1133 = vpop.f32.mrf.mxu0
    %1134 = vdwg.mxu0
    %1135 = vmatprep.subr.bf16.mxu0 0
    %1136 = vmatpush1.bf16.msra.mxu0 0
    %1137 = vmatprep.subr.bf16.mxu0 0
    %1138 = vmatpush1.bf16.msra.mxu0 0
    %1139 = vmatprep.subr.bf16.mxu0 0
    %1140 = vmatpush1.bf16.msra.mxu0 0
    %1141 = vmatprep.subr.bf16.mxu0 0
    %1142 = vmatpush1.bf16.msra.mxu0 0
    %1143 = vmatprep.subr.bf16.mxu0 0
    %1144 = vmatpush1.bf16.msra.mxu0 0
    %1145 = vmatprep.subr.bf16.mxu0 0
    %1146 = vmatpush1.bf16.msra.mxu0 0
    %1147 = vmatprep.subr.bf16.mxu0 0
    %1148 = vmatpush1.bf16.msra.mxu0 %v1085
    %1149 = vmatprep.subr.bf16.mxu0 0
    %1150 = vmatpush1.bf16.msra.mxu0 %v1084
    %1151 = vmatprep.subr.bf16.mxu0 0
    %1152 = vmatpush2.bf16.msra.mxu0 0
    %1153 = vmatprep.subr.bf16.mxu0 0
    %1154 = vmatpush2.bf16.msra.mxu0 0
    %1155 = vmatprep.subr.bf16.mxu0 0
    %1156 = vmatpush2.bf16.msra.mxu0 0
    %1157 = vmatprep.subr.bf16.mxu0 0
    %1158 = vmatpush2.bf16.msra.mxu0 0
    %1159 = vmatprep.subr.bf16.mxu0 0
    %1160 = vmatpush2.bf16.msra.mxu0 0
    %1161 = vmatprep.subr.bf16.mxu0 0
    %1162 = vmatpush2.bf16.msra.mxu0 0
    %1163 = vmatprep.subr.bf16.mxu0 0
    %1164 = vmatpush2.bf16.msra.mxu0 0
    %1165 = vmatprep.subr.bf16.mxu0 0
    %1166 = vmatpush2.bf16.msra.mxu0 0
    %1167 = vmatprep.mubr.bf16.mxu0 0
    %1168 = vmatmul.mubr.bf16.gmra.mxu0 %v1092
    %v1169 = vpop.f32.mrf.mxu0
    %v1170 = vadd.f32 0.0, %v1169
    %v1171 = vpop.f32.mrf.mxu0
    %v1172 = vpop.f32.mrf.mxu0
    %v1173 = vadd.f32 0.0, %v1172
    %v1174 = vpop.f32.mrf.mxu0
    %1175 = vdwg.mxu0
    %v1177 = vsel %vm288, %v948, 0
    %1179 = vmatprep.subr.bf16.mxu0 0
    %1180 = vmatpush1.bf16.msra.mxu0 0
    %1181 = vmatprep.subr.bf16.mxu0 0
    %1182 = vmatpush1.bf16.msra.mxu0 0
    %1183 = vmatprep.subr.bf16.mxu0 0
    %1184 = vmatpush1.bf16.msra.mxu0 0
    %1185 = vmatprep.subr.bf16.mxu0 0
    %1186 = vmatpush1.bf16.msra.mxu0 0
    %1187 = vmatprep.subr.bf16.mxu0 0
    %1188 = vmatpush1.bf16.msra.mxu0 0
    %1189 = vmatprep.subr.bf16.mxu0 0
    %1190 = vmatpush1.bf16.msra.mxu0 0
    %1191 = vmatprep.subr.bf16.mxu0 0
    %1192 = vmatpush1.bf16.msra.mxu0 %v951
    %1193 = vmatprep.subr.bf16.mxu0 0
    %1194 = vmatpush1.bf16.msra.mxu0 %v950
    %1195 = vmatprep.subr.bf16.mxu0 0
    %1196 = vmatpush2.bf16.msra.mxu0 0
    %1197 = vmatprep.subr.bf16.mxu0 0
    %1198 = vmatpush2.bf16.msra.mxu0 0
    %1199 = vmatprep.subr.bf16.mxu0 0
    %1200 = vmatpush2.bf16.msra.mxu0 0
    %1201 = vmatprep.subr.bf16.mxu0 0
    %1202 = vmatpush2.bf16.msra.mxu0 0
    %1203 = vmatprep.subr.bf16.mxu0 0
    %1204 = vmatpush2.bf16.msra.mxu0 0
    %1205 = vmatprep.subr.bf16.mxu0 0
    %1206 = vmatpush2.bf16.msra.mxu0 0
    %1207 = vmatprep.subr.bf16.mxu0 0
    %1208 = vmatpush2.bf16.msra.mxu0 0
    %1209 = vmatprep.subr.bf16.mxu0 0
    %1210 = vmatpush2.bf16.msra.mxu0 0
    %1211 = vmatprep.mubr.bf16.mxu0 0
    %1212 = vmatmul.mubr.bf16.gmra.mxu0 %v1177
    %v1213 = vpop.f32.mrf.mxu0
    %v1214 = vadd.f32 %v1129, %v1213
    %v1215 = vpop.f32.mrf.mxu0
    %v1216 = vpop.f32.mrf.mxu0
    %v1217 = vadd.f32 %v1132, %v1216
    %v1218 = vpop.f32.mrf.mxu0
    %1219 = vdwg.mxu0
    %v1221 = vsel %vm288, %v949, 0
    %1223 = vmatprep.subr.bf16.mxu0 0
    %1224 = vmatpush1.bf16.msra.mxu0 0
    %1225 = vmatprep.subr.bf16.mxu0 0
    %1226 = vmatpush1.bf16.msra.mxu0 0
    %1227 = vmatprep.subr.bf16.mxu0 0
    %1228 = vmatpush1.bf16.msra.mxu0 0
    %1229 = vmatprep.subr.bf16.mxu0 0
    %1230 = vmatpush1.bf16.msra.mxu0 0
    %1231 = vmatprep.subr.bf16.mxu0 0
    %1232 = vmatpush1.bf16.msra.mxu0 0
    %1233 = vmatprep.subr.bf16.mxu0 0
    %1234 = vmatpush1.bf16.msra.mxu0 0
    %1235 = vmatprep.subr.bf16.mxu0 0
    %1236 = vmatpush1.bf16.msra.mxu0 %v953
    %1237 = vmatprep.subr.bf16.mxu0 0
    %1238 = vmatpush1.bf16.msra.mxu0 %v952
    %1239 = vmatprep.subr.bf16.mxu0 0
    %1240 = vmatpush2.bf16.msra.mxu0 0
    %1241 = vmatprep.subr.bf16.mxu0 0
    %1242 = vmatpush2.bf16.msra.mxu0 0
    %1243 = vmatprep.subr.bf16.mxu0 0
    %1244 = vmatpush2.bf16.msra.mxu0 0
    %1245 = vmatprep.subr.bf16.mxu0 0
    %1246 = vmatpush2.bf16.msra.mxu0 0
    %1247 = vmatprep.subr.bf16.mxu0 0
    %1248 = vmatpush2.bf16.msra.mxu0 0
    %1249 = vmatprep.subr.bf16.mxu0 0
    %1250 = vmatpush2.bf16.msra.mxu0 0
    %1251 = vmatprep.subr.bf16.mxu0 0
    %1252 = vmatpush2.bf16.msra.mxu0 0
    %1253 = vmatprep.subr.bf16.mxu0 0
    %1254 = vmatpush2.bf16.msra.mxu0 0
    %1255 = vmatprep.mubr.bf16.mxu0 0
    %1256 = vmatmul.mubr.bf16.gmra.mxu0 %v1221
    %v1257 = vpop.f32.mrf.mxu0
    %v1258 = vadd.f32 %v1170, %v1257
    %v1259 = vpop.f32.mrf.mxu0
    %v1260 = vpop.f32.mrf.mxu0
    %v1261 = vadd.f32 %v1173, %v1260
    %v1262 = vpop.f32.mrf.mxu0
    %1263 = vdwg.mxu0
    %v1264 = vpack.c.bf16 %v1217, %v1214
    %v1265 = vpack.c.bf16 %v1261, %v1258
    %v1266 = vld [vmem:[%s14] sm:$0xf]
    %v1267 = vld [vmem:[%s14 + $0x4] sm:$0xf]
    %v1268 = vld [vmem:[%s14 + $0x8] sm:$0xf]
    %v1269 = vld [vmem:[%s14 + $0xc] sm:$0xf]
    %v1270 = vld [vmem:[%s15] sm:$0x1]
    %v1272 = vlaneseq
    %v1273 = vshrl.u32 %v1272, 7
    %v1274 = vsub.s32 0, %v1273
    %v1275 = vrot.slane %v1270, %v1274
    %v1281 = vunpack.c.l.b16 %v1266
    %v1282 = vunpack.c.l.b16 %v1267
    %v1283 = vunpack.c.l.b16 %v1268
    %v1284 = vunpack.c.l.b16 %v1269
    %v1285 = vpack.c.b16 %v1282, %v1281
    %v1286 = vpack.c.b16 %v1284, %v1283
    %v1290 = vsel %vm288, %v1264, 0
    %v1293 = vsel %vm288, %v1265, 0
    %1295 = vmatprep.subr.bf16.mxu0 0
    %1296 = vmatpush1.bf16.msra.mxu0 0
    %1297 = vmatprep.subr.bf16.mxu0 0
    %1298 = vmatpush1.bf16.msra.mxu0 0
    %1299 = vmatprep.subr.bf16.mxu0 0
    %1300 = vmatpush1.bf16.msra.mxu0 0
    %1301 = vmatprep.subr.bf16.mxu0 0
    %1302 = vmatpush1.bf16.msra.mxu0 0
    %1303 = vmatprep.subr.bf16.mxu0 0
    %1304 = vmatpush1.bf16.msra.mxu0 0
    %1305 = vmatprep.subr.bf16.mxu0 0
    %1306 = vmatpush1.bf16.msra.mxu0 0
    %1307 = vmatprep.subr.bf16.mxu0 0
    %1308 = vmatpush1.bf16.msra.mxu0 %v1286
    %1309 = vmatprep.subr.bf16.mxu0 0
    %1310 = vmatpush1.bf16.msra.mxu0 %v1285
    %1311 = vmatprep.subr.bf16.mxu0 0
    %1312 = vmatpush2.bf16.msra.mxu0 0
    %1313 = vmatprep.subr.bf16.mxu0 0
    %1314 = vmatpush2.bf16.msra.mxu0 0
    %1315 = vmatprep.subr.bf16.mxu0 0
    %1316 = vmatpush2.bf16.msra.mxu0 0
    %1317 = vmatprep.subr.bf16.mxu0 0
    %1318 = vmatpush2.bf16.msra.mxu0 0
    %1319 = vmatprep.subr.bf16.mxu0 0
    %1320 = vmatpush2.bf16.msra.mxu0 0
    %1321 = vmatprep.subr.bf16.mxu0 0
    %1322 = vmatpush2.bf16.msra.mxu0 0
    %1323 = vmatprep.subr.bf16.mxu0 0
    %1324 = vmatpush2.bf16.msra.mxu0 0
    %1325 = vmatprep.subr.bf16.mxu0 0
    %1326 = vmatpush2.bf16.msra.mxu0 0
    %1327 = vmatprep.mubr.bf16.mxu0 0
    %1328 = vmatmul.mubr.bf16.gmra.mxu0 %v1290
    %v1329 = vpop.f32.mrf.mxu0
    %v1330 = vadd.f32 %v1275, %v1329
    %v1331 = vpop.f32.mrf.mxu0
    %v1332 = vpop.f32.mrf.mxu0
    %v1333 = vadd.f32 %v1275, %v1332
    %v1334 = vpop.f32.mrf.mxu0
    %1335 = vmatprep.mubr.bf16.mxu0 0
    %1336 = vmatmul.mubr.bf16.gmra.mxu0 %v1293
    %v1337 = vpop.f32.mrf.mxu0
    %v1338 = vadd.f32 %v1275, %v1337
    %v1339 = vpop.f32.mrf.mxu0
    %v1340 = vpop.f32.mrf.mxu0
    %v1341 = vadd.f32 %v1275, %v1340
    %v1342 = vpop.f32.mrf.mxu0
    %1343 = vdwg.mxu0
    %v1344 = vld [vmem:[%s16] sm:$0x1]
    %v1345 = vld [vmem:[%s17] sm:$0x1]
    %v1346 = vsel %vm288, %v1330, 0.0
    %1347 = vadd.xlane.f32.xlu0 %v1346
    %v1348 = vpop.xlane.xlu0 %1347
    %v1349 = vsel %vm288, %v1333, 0.0
    %1350 = vadd.xlane.f32.xlu0 %v1349
    %v1351 = vpop.xlane.xlu0 %1350
    %v1352 = vsel %vm288, %v1338, 0.0
    %1353 = vadd.xlane.f32.xlu0 %v1352
    %v1354 = vpop.xlane.xlu0 %1353
    %v1355 = vsel %vm288, %v1341, 0.0
    %1356 = vadd.xlane.f32.xlu0 %v1355
    %v1357 = vpop.xlane.xlu0 %1356
    %v1358 = vmul.f32 %v1348, %v301
    %v1359 = vmul.f32 %v1351, %v301
    %v1360 = vmul.f32 %v1354, %v301
    %v1361 = vmul.f32 %v1357, %v301
    %v1362 = vsub.f32 %v1330, %v1358
    %v1363 = vsub.f32 %v1333, %v1359
    %v1364 = vsub.f32 %v1338, %v1360
    %v1365 = vsub.f32 %v1341, %v1361
    %v1366 = vmul.f32 %v1362, %v1362
    %v1367 = vmul.f32 %v1363, %v1363
    %v1368 = vmul.f32 %v1364, %v1364
    %v1369 = vmul.f32 %v1365, %v1365
    %v1370 = vsel %vm288, %v1366, 0.0
    %1371 = vadd.xlane.f32.xlu0 %v1370
    %v1372 = vpop.xlane.xlu0 %1371
    %v1373 = vsel %vm288, %v1367, 0.0
    %1374 = vadd.xlane.f32.xlu0 %v1373
    %v1375 = vpop.xlane.xlu0 %1374
    %v1376 = vsel %vm288, %v1368, 0.0
    %1377 = vadd.xlane.f32.xlu0 %v1376
    %v1378 = vpop.xlane.xlu0 %1377
    %v1379 = vsel %vm288, %v1369, 0.0
    %1380 = vadd.xlane.f32.xlu0 %v1379
    %v1381 = vpop.xlane.xlu0 %1380
    %v1382 = vmul.f32 %v1372, %v301
    %v1383 = vmul.f32 %v1375, %v301
    %v1384 = vmul.f32 %v1378, %v301
    %v1385 = vmul.f32 %v1381, %v301
    %v1386 = vadd.f32 %v1382, 1e-05
    %v1387 = vadd.f32 %v1383, 1e-05
    %v1388 = vadd.f32 %v1384, 1e-05
    %v1389 = vadd.f32 %v1385, 1e-05
    %v1390 = vrsqrt.pop %v1386
    %v1391 = vrsqrt.pop %v1387
    %v1392 = vrsqrt.pop %v1388
    %v1393 = vrsqrt.pop %v1389
    %v1394 = vmul.f32 %v1362, %v1390
    %v1395 = vmul.f32 %v1363, %v1391
    %v1396 = vmul.f32 %v1364, %v1392
    %v1397 = vmul.f32 %v1365, %v1393
    %v1399 = vlaneseq
    %v1400 = vshrl.u32 %v1399, 7
    %v1401 = vsub.s32 0, %v1400
    %v1402 = vrot.slane %v1344, %v1401
    %v1404 = vmul.f32 %v1394, %v1402
    %v1405 = vmul.f32 %v1395, %v1402
    %v1406 = vmul.f32 %v1396, %v1402
    %v1407 = vmul.f32 %v1397, %v1402
    %v1409 = vlaneseq
    %v1410 = vshrl.u32 %v1409, 7
    %v1411 = vsub.s32 0, %v1410
    %v1412 = vrot.slane %v1345, %v1411
    %v1414 = vadd.f32 %v1404, %v1412
    %v1415 = vadd.f32 %v1405, %v1412
    %v1416 = vadd.f32 %v1406, %v1412
    %v1417 = vadd.f32 %v1407, %v1412
    %v1418 = vmul.f32 %v1414, 0.5
    %v1419 = vmul.f32 %v1415, 0.5
    %v1420 = vmul.f32 %v1416, 0.5
    %v1421 = vmul.f32 %v1417, 0.5
    %v1422 = vmul.f32 %v1414, 0.70710677
    %v1423 = vmul.f32 %v1415, 0.70710677
    %v1424 = vmul.f32 %v1416, 0.70710677
    %v1425 = vmul.f32 %v1417, 0.70710677
    %v1426 = verf.f32.pop %v1422
    %v1427 = verf.f32.pop %v1423
    %v1428 = verf.f32.pop %v1424
    %v1429 = verf.f32.pop %v1425
    %v1430 = vadd.f32 %v1426, 1.0
    %v1431 = vadd.f32 %v1427, 1.0
    %v1432 = vadd.f32 %v1428, 1.0
    %v1433 = vadd.f32 %v1429, 1.0
    %v1434 = vmul.f32 %v1418, %v1430
    %v1435 = vmul.f32 %v1419, %v1431
    %v1436 = vmul.f32 %v1420, %v1432
    %v1437 = vmul.f32 %v1421, %v1433
    %v1438 = vpack.c.bf16 %v1435, %v1434
    %v1439 = vpack.c.bf16 %v1437, %v1436
    %v1440 = vld [vmem:[#allocation16] sm:$0xf]
    %v1441 = vld [vmem:[#allocation16 + $0x4] sm:$0xf]
    %v1442 = vld [vmem:[#allocation16 + $0x8] sm:$0xf]
    %v1443 = vld [vmem:[#allocation16 + $0xc] sm:$0xf]
    %v1444 = vld [vmem:[%s19] sm:$0x1]
    %v1446 = vlaneseq
    %v1447 = vshrl.u32 %v1446, 7
    %v1448 = vsub.s32 0, %v1447
    %v1449 = vrot.slane %v1444, %v1448
    %v1455 = vunpack.c.l.b16 %v1440
    %v1456 = vunpack.c.l.b16 %v1441
    %v1457 = vunpack.c.l.b16 %v1442
    %v1458 = vunpack.c.l.b16 %v1443
    %v1459 = vpack.c.b16 %v1456, %v1455
    %v1460 = vpack.c.b16 %v1458, %v1457
    %v1464 = vsel %vm288, %v1438, 0
    %v1467 = vsel %vm288, %v1439, 0
    %1469 = vmatprep.subr.bf16.mxu0 0
    %1470 = vmatpush1.bf16.msra.mxu0 0
    %1471 = vmatprep.subr.bf16.mxu0 0
    %1472 = vmatpush1.bf16.msra.mxu0 0
    %1473 = vmatprep.subr.bf16.mxu0 0
    %1474 = vmatpush1.bf16.msra.mxu0 0
    %1475 = vmatprep.subr.bf16.mxu0 0
    %1476 = vmatpush1.bf16.msra.mxu0 0
    %1477 = vmatprep.subr.bf16.mxu0 0
    %1478 = vmatpush1.bf16.msra.mxu0 0
    %1479 = vmatprep.subr.bf16.mxu0 0
    %1480 = vmatpush1.bf16.msra.mxu0 0
    %1481 = vmatprep.subr.bf16.mxu0 0
    %1482 = vmatpush1.bf16.msra.mxu0 %v1460
    %1483 = vmatprep.subr.bf16.mxu0 0
    %1484 = vmatpush1.bf16.msra.mxu0 %v1459
    %1485 = vmatprep.subr.bf16.mxu0 0
    %1486 = vmatpush2.bf16.msra.mxu0 0
    %1487 = vmatprep.subr.bf16.mxu0 0
    %1488 = vmatpush2.bf16.msra.mxu0 0
    %1489 = vmatprep.subr.bf16.mxu0 0
    %1490 = vmatpush2.bf16.msra.mxu0 0
    %1491 = vmatprep.subr.bf16.mxu0 0
    %1492 = vmatpush2.bf16.msra.mxu0 0
    %1493 = vmatprep.subr.bf16.mxu0 0
    %1494 = vmatpush2.bf16.msra.mxu0 0
    %1495 = vmatprep.subr.bf16.mxu0 0
    %1496 = vmatpush2.bf16.msra.mxu0 0
    %1497 = vmatprep.subr.bf16.mxu0 0
    %1498 = vmatpush2.bf16.msra.mxu0 0
    %1499 = vmatprep.subr.bf16.mxu0 0
    %1500 = vmatpush2.bf16.msra.mxu0 0
    %1501 = vmatprep.mubr.bf16.mxu0 0
    %1502 = vmatmul.mubr.bf16.gmra.mxu0 %v1464
    %v1503 = vpop.f32.mrf.mxu0
    %v1504 = vadd.f32 %v1449, %v1503
    %v1505 = vpop.f32.mrf.mxu0
    %v1506 = vpop.f32.mrf.mxu0
    %v1507 = vadd.f32 %v1449, %v1506
    %v1508 = vpop.f32.mrf.mxu0
    %1509 = vmatprep.mubr.bf16.mxu0 0
    %1510 = vmatmul.mubr.bf16.gmra.mxu0 %v1467
    %v1511 = vpop.f32.mrf.mxu0
    %v1512 = vadd.f32 %v1449, %v1511
    %v1513 = vpop.f32.mrf.mxu0
    %v1514 = vpop.f32.mrf.mxu0
    %v1515 = vadd.f32 %v1449, %v1514
    %v1516 = vpop.f32.mrf.mxu0
    %1517 = vdwg.mxu0
    %v1518 = vld [vmem:[%s20] sm:$0x1]
    %v1519 = vld [vmem:[%s21] sm:$0x1]
    %v1520 = vsel %vm230, %v1504, 0.0
    %1521 = vadd.xlane.f32.xlu0 %v1520
    %v1522 = vpop.xlane.xlu0 %1521
    %v1523 = vsel %vm230, %v1507, 0.0
    %1524 = vadd.xlane.f32.xlu0 %v1523
    %v1525 = vpop.xlane.xlu0 %1524
    %v1526 = vsel %vm230, %v1512, 0.0
    %1527 = vadd.xlane.f32.xlu0 %v1526
    %v1528 = vpop.xlane.xlu0 %1527
    %v1529 = vsel %vm230, %v1515, 0.0
    %1530 = vadd.xlane.f32.xlu0 %v1529
    %v1531 = vpop.xlane.xlu0 %1530
    %v1532 = vrcp.pop 64.0
    %v1533 = vmul.f32 %v1522, %v1532
    %v1534 = vmul.f32 %v1525, %v1532
    %v1535 = vmul.f32 %v1528, %v1532
    %v1536 = vmul.f32 %v1531, %v1532
    %v1537 = vsub.f32 %v1504, %v1533
    %v1538 = vsub.f32 %v1507, %v1534
    %v1539 = vsub.f32 %v1512, %v1535
    %v1540 = vsub.f32 %v1515, %v1536
    %v1541 = vmul.f32 %v1537, %v1537
    %v1542 = vmul.f32 %v1538, %v1538
    %v1543 = vmul.f32 %v1539, %v1539
    %v1544 = vmul.f32 %v1540, %v1540
    %v1545 = vsel %vm230, %v1541, 0.0
    %1546 = vadd.xlane.f32.xlu0 %v1545
    %v1547 = vpop.xlane.xlu0 %1546
    %v1548 = vsel %vm230, %v1542, 0.0
    %1549 = vadd.xlane.f32.xlu0 %v1548
    %v1550 = vpop.xlane.xlu0 %1549
    %v1551 = vsel %vm230, %v1543, 0.0
    %1552 = vadd.xlane.f32.xlu0 %v1551
    %v1553 = vpop.xlane.xlu0 %1552
    %v1554 = vsel %vm230, %v1544, 0.0
    %1555 = vadd.xlane.f32.xlu0 %v1554
    %v1556 = vpop.xlane.xlu0 %1555
    %v1557 = vmul.f32 %v1547, %v1532
    %v1558 = vmul.f32 %v1550, %v1532
    %v1559 = vmul.f32 %v1553, %v1532
    %v1560 = vmul.f32 %v1556, %v1532
    %v1561 = vadd.f32 %v1557, 1e-05
    %v1562 = vadd.f32 %v1558, 1e-05
    %v1563 = vadd.f32 %v1559, 1e-05
    %v1564 = vadd.f32 %v1560, 1e-05
    %v1565 = vrsqrt.pop %v1561
    %v1566 = vrsqrt.pop %v1562
    %v1567 = vrsqrt.pop %v1563
    %v1568 = vrsqrt.pop %v1564
    %v1569 = vmul.f32 %v1537, %v1565
    %v1570 = vmul.f32 %v1538, %v1566
    %v1571 = vmul.f32 %v1539, %v1567
    %v1572 = vmul.f32 %v1540, %v1568
    %v1574 = vlaneseq
    %v1575 = vshrl.u32 %v1574, 7
    %v1576 = vsub.s32 0, %v1575
    %v1577 = vrot.slane %v1518, %v1576
    %v1579 = vmul.f32 %v1569, %v1577
    %v1580 = vmul.f32 %v1570, %v1577
    %v1581 = vmul.f32 %v1571, %v1577
    %v1582 = vmul.f32 %v1572, %v1577
    %v1584 = vlaneseq
    %v1585 = vshrl.u32 %v1584, 7
    %v1586 = vsub.s32 0, %v1585
    %v1587 = vrot.slane %v1519, %v1586
    %v1589 = vadd.f32 %v1579, %v1587
    %v1590 = vadd.f32 %v1580, %v1587
    %v1591 = vadd.f32 %v1581, %v1587
    %v1592 = vadd.f32 %v1582, %v1587
    %v1593 = vadd.f32 %v185, %v1589
    %v1594 = vadd.f32 %v186, %v1590
    %v1595 = vadd.f32 %v187, %v1591
    %v1596 = vadd.f32 %v188, %v1592
    %v1597 = vmul.f32 %v1593, 0.5
    %v1598 = vmul.f32 %v1594, 0.5
    %v1599 = vmul.f32 %v1595, 0.5
    %v1600 = vmul.f32 %v1596, 0.5
    %v1601 = vmul.f32 %v1593, 0.70710677
    %v1602 = vmul.f32 %v1594, 0.70710677
    %v1603 = vmul.f32 %v1595, 0.70710677
    %v1604 = vmul.f32 %v1596, 0.70710677
    %v1605 = verf.f32.pop %v1601
    %v1606 = verf.f32.pop %v1602
    %v1607 = verf.f32.pop %v1603
    %v1608 = verf.f32.pop %v1604
    %v1609 = vadd.f32 %v1605, 1.0
    %v1610 = vadd.f32 %v1606, 1.0
    %v1611 = vadd.f32 %v1607, 1.0
    %v1612 = vadd.f32 %v1608, 1.0
    %v1613 = vmul.f32 %v1597, %v1609
    %v1614 = vmul.f32 %v1598, %v1610
    %v1615 = vmul.f32 %v1599, %v1611
    %v1616 = vmul.f32 %v1600, %v1612
    %1617 = vst.msk [vmem:[#allocation17] sm:$0xff] %vm230, %v1613
    %1618 = vst.msk [vmem:[#allocation17 + $0x8] sm:$0xff] %vm230, %v1614
    %1619 = vst.msk [vmem:[#allocation17 + $0x10] sm:$0xff] %vm230, %v1615
    %1620 = vst.msk [vmem:[#allocation17 + $0x18] sm:$0xff] %vm230, %v1616
    // Predicated region
    $region126: #{tpu_custom_call.1} parent=1 // pred_check
      _
    $region127: #{tpu_custom_call.1} parent=1 // pred_check_branch
      %1622 = sbr.rel (0) target = $region129
    $region128: #{tpu_custom_call.1} parent=1 // pred_region
      %s1624 = ssub.s32 512, 512
      %1625 = vsyncadd [#allocation4], %s1624
      %s1626 = sshll.u32 [#allocation17], 4
      %s1627 = int_to_ptr.vmem [resolvable:$true] %s1626
      %1632 = dma.vmem_to_hbm [thread:$0]  %s1627, 512, %s22, [#allocation4], 128, 128, 8
    $region129: #{tpu_custom_call.1} parent=1 // pred_fallthru
      _
    // Predicated region
    $region130: #{tpu_custom_call.1} parent=1 // pred_check
      _
    $region131: #{tpu_custom_call.1} parent=1 // pred_check_branch
      %1634 = sbr.rel (0) target = $region133
    $region132: #{tpu_custom_call.1} parent=1 // pred_region
      %1635 = dma.done [#allocation4], 512
    $region133: #{tpu_custom_call.1} parent=1 // pred_fallthru
      _
    %1636 = vsyncpa [#allocation3], 1
    %1637 = vsyncpa [#allocation6], 1
    %1638 = vsyncpa [#allocation9], 1
    %1639 = vsyncpa [#allocation12], 1
    %1640 = vsyncpa [#allocation15], 1
    %1641 = vsyncpa [#allocation4], 1

</llo_original>
